<compile_context>
chip_gen: v5e
topology: v5e:2x2
jax: 0.10.0
libtpu: 0.0.40
codegen_flags: <defaults>
</compile_context>

<pallas_src>
import functools
import math

import jax
import jax.numpy as jnp
from jax import lax
from jax.experimental import pallas as pl
from jax.experimental.pallas import tpu as pltpu


def _clamp_vmem_limit(nbytes: int) -> int:
    """Size-derived VMEM budget with headroom, clamped to v7x's 64 MiB physical."""
    return int(max(16 * 1024 * 1024, min(2 * nbytes, 64 * 1024 * 1024)))


# ---------------------------------------------------------------------------
# Pass 1: QKV projection  proj = x @ W.T   (bf16 MXU operands, f32 accumulation)
# ---------------------------------------------------------------------------
def _proj_kernel(x_ref, w_ref, o_ref):
    a = x_ref[...].astype(jnp.bfloat16)          # (tm, d)  cast fused in-kernel
    b = w_ref[...].astype(jnp.bfloat16)          # (tn, d)
    # Contract the shared last dim: proj[i, j] = sum_k x[i, k] * w[j, k]  (== x @ W.T)
    o_ref[...] = lax.dot_general(
        a, b, dimension_numbers=(((1,), (1,)), ((), ())),
        preferred_element_type=jnp.float32).astype(o_ref.dtype)


def _project_qkv(x, w, *, tile=384):
    n, d = x.shape                               # n == 3 * d, so n % 384 == 0 when d % 128 == 0
    assert n % tile == 0
    grid = (n // tile, n // tile)
    est = 2 * 2 * (tile * d * 4) + 2 * tile * tile * 2   # db'd f32 inputs + db'd bf16 out
    return pl.pallas_call(
        _proj_kernel,
        out_shape=jax.ShapeDtypeStruct((n, n), jnp.bfloat16),
        grid_spec=pltpu.PrefetchScalarGridSpec(
            num_scalar_prefetch=0,
            grid=grid,
            in_specs=[
                pl.BlockSpec((tile, d), lambda i, j: (i, 0)),
                pl.BlockSpec((tile, d), lambda i, j: (j, 0)),
            ],
            out_specs=pl.BlockSpec((tile, tile), lambda i, j: (i, j)),
        ),
        compiler_params=pltpu.CompilerParams(
            dimension_semantics=("parallel", "parallel"),
            vmem_limit_bytes=_clamp_vmem_limit(est),
        ),
    )(x, w)


# ---------------------------------------------------------------------------
# Pass 2: flash-style attention over the projected Q / K / V row windows
# ---------------------------------------------------------------------------
def _flash_attn_kernel(q_ref, k_ref, v_ref, o_ref, m_sc, l_sc, acc_sc, *, scale):
    ki = pl.program_id(1)

    @pl.when(ki == 0)
    def _():
        m_sc[...] = jnp.full_like(m_sc, -jnp.inf)
        l_sc[...] = jnp.zeros_like(l_sc)
        acc_sc[...] = jnp.zeros_like(acc_sc)

    # scores = Q @ K.T * scale, contracting the last dims (no transpose copy).
    s = lax.dot_general(
        q_ref[...], k_ref[...],
        dimension_numbers=(((1,), (1,)), ((), ())),
        preferred_element_type=jnp.float32) * scale              # (TQ, TK) f32

    # Online (flash-style) softmax accumulation, all in f32.
    m_prev = m_sc[...]
    m_new = jnp.maximum(m_prev, jnp.max(s, axis=-1, keepdims=True))
    alpha = jnp.exp(m_prev - m_new)
    p = jnp.exp(s - m_new)
    l_sc[...] = alpha * l_sc[...] + jnp.sum(p, axis=-1, keepdims=True)
    acc_sc[...] = alpha * acc_sc[...] + jnp.dot(
        p.astype(jnp.bfloat16), v_ref[...], preferred_element_type=jnp.float32)
    m_sc[...] = m_new

    @pl.when(ki == pl.num_programs(1) - 1)
    def _():
        inv_l = pl.reciprocal(l_sc[...], approx=True)             # EUP slot (~free)
        o_ref[...] = (acc_sc[...] * inv_l).astype(o_ref.dtype)


def self_attention(x: jax.Array, w: jax.Array, *, block_q: int | None = None,
                   block_k: int | None = None, out_dtype=jnp.float32) -> jax.Array:
    """x: (3*d_model, d_model) f32, w: (3*d_model, d_model) f32 (nn.Linear weight)."""
    n, d = x.shape
    assert n == 3 * d, "forward requires seq == 3 * d_model (torch.split semantics)"
    assert w.shape == (3 * d, d)
    assert d % 128 == 0, "d_model must be a multiple of 128 for lane-dense tiling"

    # --- tile selection (per perf review) ---
    if block_k is None:
        block_k = 256 if d % 256 == 0 else 128   # 256-wide score tiles fill v6e/v7x MXU
    if block_q is None:
        block_q = 128 if d >= 256 else d         # keep nq >= 2 for the v7x megacore split
    block_q = min(block_q, d)
    block_k = min(block_k, d)
    assert d % block_q == 0 and d % block_k == 0

    # Pass 1: project QKV exactly once (casts folded into the kernel).
    proj = _project_qkv(x, w)                    # (3d, 3d) bf16

    nq = d // block_q
    nk = d // block_k
    k_off = d // block_k                         # K rows start at row d of proj
    v_off = 2 * (d // block_k)                   # V rows start at row 2d of proj
    scale = 1.0 / math.sqrt(d)

    out_bytes = jnp.dtype(out_dtype).itemsize
    est = (2 * block_q * 3 * d * 2               # q tile (double-buffered, bf16)
           + 2 * 2 * block_k * 3 * d * 2         # k, v tiles (double-buffered, bf16)
           + 2 * block_q * 3 * d * out_bytes     # output tile (double-buffered)
           + block_q * 3 * d * 4 + 8 * block_q)  # acc + m/l scratch

    grid_spec = pltpu.PrefetchScalarGridSpec(
        num_scalar_prefetch=0,
        grid=(nq, nk),
        in_specs=[
            pl.BlockSpec((block_q, 3 * d), lambda qi, ki: (qi, 0)),
            pl.BlockSpec((block_k, 3 * d), lambda qi, ki: (k_off + ki, 0)),
            pl.BlockSpec((block_k, 3 * d), lambda qi, ki: (v_off + ki, 0)),
        ],
        out_specs=pl.BlockSpec((block_q, 3 * d), lambda qi, ki: (qi, 0)),
        scratch_shapes=[
            pltpu.VMEM((block_q, 1), jnp.float32),        # running max m
            pltpu.VMEM((block_q, 1), jnp.float32),        # running denom l
            pltpu.VMEM((block_q, 3 * d), jnp.float32),    # output accumulator
        ],
    )

    return pl.pallas_call(
        functools.partial(_flash_attn_kernel, scale=scale),
        out_shape=jax.ShapeDtypeStruct((d, 3 * d), out_dtype),
        grid_spec=grid_spec,
        compiler_params=pltpu.CompilerParams(
            # Q-tile axis parallel (v7x megacore split); KV axis is the reduction.
            dimension_semantics=("parallel", "arbitrary"),
            vmem_limit_bytes=_clamp_vmem_limit(est),
        ),
    )(proj, proj, proj)


def _reference(x, w):
    d = x.shape[1]
    proj = x @ w.T
    q, k, v = proj[0:d], proj[d:2 * d], proj[2 * d:3 * d]
    scores = (q @ k.T) / math.sqrt(d)
    attn = jax.nn.softmax(scores, axis=-1)
    return attn @ v


if __name__ == "__main__":
    d_model = 256
    seq = 3 * d_model                            # required by the module's split semantics

    key = jax.random.PRNGKey(0)
    kx, kw = jax.random.split(key)

    # Deterministic input and nn.Linear-style weight init (uniform, bound 1/sqrt(fan_in)).
    x = jax.random.normal(kx, (seq, d_model), dtype=jnp.float32)
    bound = 1.0 / math.sqrt(d_model)
    w = jax.random.uniform(kw, (3 * d_model, d_model), dtype=jnp.float32,
                           minval=-bound, maxval=bound)

    out = self_attention(x, w)
    out = jax.block_until_ready(out)

    ref = _reference(x, w)
    assert out.shape == (d_model, 3 * d_model)
    # bf16 MXU operands -> tolerance looser than the pure-f32 path.
    assert jnp.allclose(out, ref, atol=2e-2, rtol=2e-2), "mismatch vs reference"

    print("KERNEL_OK")
</pallas_src>

<mosaic_0001>
module attributes {stable_mosaic.version = 11 : i64} {
  func.func @_proj_kernel(%arg0: i32, %arg1: i32, %arg2: memref<384x256xf32, #tpu.memory_space<vmem>>, %arg3: memref<384x256xf32, #tpu.memory_space<vmem>>, %arg4: memref<384x384xbf16, #tpu.memory_space<vmem>>) attributes {dimension_semantics = [#tpu.dimension_semantics<parallel>, #tpu.dimension_semantics<parallel>], iteration_bounds = array<i64: 2, 2>, scalar_prefetch = 0 : i64, scratch_operands = 0 : i64, tpu.core_type = #tpu.core_type<tc>, window_params = [{transform_indices = @transform_0, window_bounds = array<i64: 384, 256>}, {transform_indices = @transform_1, window_bounds = array<i64: 384, 256>}, {transform_indices = @transform_2, window_bounds = array<i64: 384, 384>}]} {
    %c0 = arith.constant 0 : index
    %c0_0 = arith.constant 0 : index
    %0 = vector.load %arg2[%c0, %c0_0] : memref<384x256xf32, #tpu.memory_space<vmem>>, vector<384x256xf32>
    %1 = arith.truncf %0 : vector<384x256xf32> to vector<384x256xbf16>
    %c0_1 = arith.constant 0 : index
    %c0_2 = arith.constant 0 : index
    %2 = vector.load %arg3[%c0_1, %c0_2] : memref<384x256xf32, #tpu.memory_space<vmem>>, vector<384x256xf32>
    %3 = arith.truncf %2 : vector<384x256xf32> to vector<384x256xbf16>
    %cst = arith.constant dense<0.000000e+00> : vector<384x384xf32>
    %4 = tpu.matmul %1, %3, %cst {dimension_numbers = #tpu.dot_dimension_numbers<[1], [1], [0], [0], [0, 0, 1, 0], [], []>} : vector<384x256xbf16>, vector<384x256xbf16>, vector<384x384xf32> -> vector<384x384xf32>
    %5 = arith.truncf %4 : vector<384x384xf32> to vector<384x384xbf16>
    %c0_3 = arith.constant 0 : index
    %c0_4 = arith.constant 0 : index
    %6 = vector.load %arg4[%c0_3, %c0_4] : memref<384x384xbf16, #tpu.memory_space<vmem>>, vector<384x384xbf16>
    tpu.vector_store %arg4[%c0_3, %c0_4], %5 {strides = array<i32>} : memref<384x384xbf16, #tpu.memory_space<vmem>>, vector<384x384xbf16>,
    return
  }
  func.func @transform_0(%arg0: i32, %arg1: i32) -> (i32, i32) {
    %c0_i32 = arith.constant 0 : i32
    %c0_i32_0 = arith.constant 0 : i32
    return %arg0, %c0_i32 : i32, i32
  }
  func.func @transform_1(%arg0: i32, %arg1: i32) -> (i32, i32) {
    %c0_i32 = arith.constant 0 : i32
    %c0_i32_0 = arith.constant 0 : i32
    return %arg1, %c0_i32 : i32, i32
  }
  func.func @transform_2(%arg0: i32, %arg1: i32) -> (i32, i32) {
    %c0_i32 = arith.constant 0 : i32
    return %arg0, %arg1 : i32, i32
  }
}

</mosaic_0001>

<llo_original>
// kernel: tpu_custom_call.1
$region0: #{tpu_custom_call.1}
  #allocation0 [shape = 'u32[]', space=smem, size = 0x4, offset = 0x4, fixed_abs, tag = 'smem constant byte address 0x4 - core index']
  #allocation1 [shape = 'u32[72,128]{1,0:T(1,128)}', space=vmem, size = 0x9000, scoped, tag = 'internal scratch']
  %s0 = inlined_call_operand.hbm [shape: f32[768,256], index: 0, kind: input, shape index: {}]
  %s1 = inlined_call_operand.hbm [shape: f32[768,256], index: 1, kind: input, shape index: {}]
  %s2 = inlined_call_operand.hbm [shape: bf16[768,768], index: 2, kind: output, shape index: {}]
  %s3 = sld [smem:[#allocation0]]
  $region49: #{tpu_custom_call.1} parent=0
    _
  %s5 = ssub.s32 1, %s3
  %s6 = scalar_select 0, %s5, %s3
  $region1: #{tpu_custom_call.1} parent=0
    #allocation2 [shape = 'u8[786432]{0}', space=vmem, size = 0xc0000, scoped, tag = 'input window, operand 0']
    #allocation3 [shape = 's32[2]{0}', space=sflag, size = 0x8, scoped, tag = 'scoped memory for tpu_custom_call.1']
    #allocation4 [shape = 's32[2]{0}', space=sflag, size = 0x8, scoped, tag = 'scoped memory for tpu_custom_call.1']
    #allocation5 [shape = 'u8[786432]{0}', space=vmem, size = 0xc0000, scoped, tag = 'input window, operand 1']
    #allocation6 [shape = 's32[2]{0}', space=sflag, size = 0x8, scoped, tag = 'scoped memory for tpu_custom_call.1']
    #allocation7 [shape = 'u8[589824]{0}', space=vmem, size = 0x90000, scoped, tag = 'output window, operand 0']
    %7 = vsyncpa [#allocation3], 0
    %s8 = scalar_lea.sflag [#allocation3], 1
    %9 = vsyncpa %s8, 0
    %10 = vsyncpa [#allocation6], 0
    %s11 = scalar_lea.sflag [#allocation6], 1
    %12 = vsyncpa %s11, 0
    %13 = vsyncpa [#allocation4], 0
    %s14 = scalar_lea.sflag [#allocation4], 1
    %15 = vsyncpa %s14, 0
    loop: start=0, step=1, limit=6
    $region2: #{tpu_custom_call.1} parent=1 // loop_pre_header
      _
    $region3: #{tpu_custom_call.1} parent=1 // loop_header
      %s17 = sphi 0, %s21
      %p18 = scmp.ge.s32.totalorder %s17, 6
      %s24 = sphi 0, %s36
      %s25 = sphi 0, %s32
      %s26 = sphi 0, %s24
      %s27 = sphi 0, %s25
      %s28 = sphi 0, %s26
      %s29 = sphi 0, %s27
      %s39 = sphi 0, %s41
      %s42 = sphi 0, %s39
      %s43 = sphi 0, %s42
      %s59 = sphi 0, %s43
      %s65 = sphi 0, %s67
      %s68 = sphi 0, %s65
      %s69 = sphi 0, %s68
      %s85 = sphi 0, %s69
      %s93 = sphi 0, %s95
      %s96 = sphi 0, %s93
      %s97 = sphi 0, %s96
      %s113 = sphi 0, %s97
    $region4: #{tpu_custom_call.1} parent=1 // loop_header_branch
      %20 = sbr.rel (%p18) target = $region8
    $region5: #{tpu_custom_call.1} parent=1 // loop_body
      %s22 = ssub.s32 %s17, 1
      %s23 = ssub.s32 %s17, 2
      %s30 = sadd.s32 1, %s25
      %p31 = scmp.ge.s32.totalorder %s30, 2
      %s32 = scalar_select %p31, 0, %s30
      %s33 = sadd.s32 1, %s24
      %s34 = scalar_select %p31, %s33, %s24
      %p35 = scmp.ge.s32.totalorder %s34, 2
      %s36 = scalar_select %p35, 0, %s34
      %s37 = ssub.s32 %s24, %s36
      %p38 = scmp.eq.s32.totalorder %s37, 0
      %s40 = sadd.s32 %s39, 1
      %s41 = scalar_select %p38, %s39, %s40
      %p44 = pneg %p38
      %p45 = scmp.eq.s32.totalorder %s17, 3
      %p46 = por %p44, %p45
      %p47 = scmp.ne.s32.totalorder %s39, %s42
      %p48 = scmp.eq.s32.totalorder %s17, 0
      %p49 = por %p47, %p48
      %p50 = scmp.ne.s32.totalorder %s39, %s42
      %p51 = scmp.eq.s32.totalorder %s22, 3
      %p52 = por %p50, %p51
      %p53 = scmp.ne.s32.totalorder %s42, %s43
      %p54 = scmp.eq.s32.totalorder %s22, 0
      %p55 = por %p53, %p54
      %p56 = scmp.ne.s32.totalorder %s42, %s43
      %p57 = scmp.eq.s32.totalorder %s23, 3
      %p58 = por %p56, %p57
      %p60 = scmp.ne.s32.totalorder %s43, %s59
      %p61 = scmp.eq.s32.totalorder %s23, 0
      %p62 = por %p60, %p61
      %s63 = ssub.s32 %s25, %s32
      %p64 = scmp.eq.s32.totalorder %s63, 0
      %s66 = sadd.s32 %s65, 1
      %s67 = scalar_select %p64, %s65, %s66
      %p70 = pneg %p64
      %p71 = scmp.eq.s32.totalorder %s17, 3
      %p72 = por %p70, %p71
      %p73 = scmp.ne.s32.totalorder %s65, %s68
      %p74 = scmp.eq.s32.totalorder %s17, 0
      %p75 = por %p73, %p74
      %p76 = scmp.ne.s32.totalorder %s65, %s68
      %p77 = scmp.eq.s32.totalorder %s22, 3
      %p78 = por %p76, %p77
      %p79 = scmp.ne.s32.totalorder %s68, %s69
      %p80 = scmp.eq.s32.totalorder %s22, 0
      %p81 = por %p79, %p80
      %p82 = scmp.ne.s32.totalorder %s68, %s69
      %p83 = scmp.eq.s32.totalorder %s23, 3
      %p84 = por %p82, %p83
      %p86 = scmp.ne.s32.totalorder %s69, %s85
      %p87 = scmp.eq.s32.totalorder %s23, 0
      %p88 = por %p86, %p87
      %s89 = ssub.s32 %s24, %s36
      %s90 = ssub.s32 %s25, %s32
      %s91 = sor.u32 %s89, %s90
      %p92 = scmp.eq.s32.totalorder %s91, 0
      %s94 = sadd.s32 %s93, 1
      %s95 = scalar_select %p92, %s93, %s94
      %p98 = pneg %p92
      %p99 = scmp.eq.s32.totalorder %s17, 3
      %p100 = por %p98, %p99
      %p101 = scmp.ne.s32.totalorder %s93, %s96
      %p102 = scmp.eq.s32.totalorder %s17, 0
      %p103 = por %p101, %p102
      %p104 = scmp.ne.s32.totalorder %s93, %s96
      %p105 = scmp.eq.s32.totalorder %s22, 3
      %p106 = por %p104, %p105
      %p107 = scmp.ne.s32.totalorder %s96, %s97
      %p108 = scmp.eq.s32.totalorder %s22, 0
      %p109 = por %p107, %p108
      %p110 = scmp.ne.s32.totalorder %s96, %s97
      %p111 = scmp.eq.s32.totalorder %s23, 3
      %p112 = por %p110, %p111
      %p114 = scmp.ne.s32.totalorder %s97, %s113
      %p115 = scmp.eq.s32.totalorder %s23, 0
      %p116 = por %p114, %p115
      %p117 = scmp.le.s32.totalorder 1, %s17
      %p118 = scmp.lt.s32.totalorder %s17, 5
      %p119 = pnand %p117, %p118
      %p120 = pneg %p119
      // Predicated region
      $region9: #{tpu_custom_call.1} parent=5 // pred_check
        _
      $region10: #{tpu_custom_call.1} parent=5 // pred_check_branch
        %122 = sbr.rel (%p119) target = $region12
      $region11: #{tpu_custom_call.1} parent=5 // pred_region
        %s123 = ssub.s32 %s17, 1
      $region12: #{tpu_custom_call.1} parent=5 // pred_fallthru
        _
      %p124 = scmp.lt.s32.totalorder %s17, 4
      // Predicated region
      $region13: #{tpu_custom_call.1} parent=5 // pred_check
        %p125 = pneg %p124
      $region14: #{tpu_custom_call.1} parent=5 // pred_check_branch
        %127 = sbr.rel (%p125) target = $region16
      $region15: #{tpu_custom_call.1} parent=5 // pred_region
        // Predicated region
        $region17: #{tpu_custom_call.1} parent=15 // pred_check
          %p128 = pneg %p49
        $region18: #{tpu_custom_call.1} parent=15 // pred_check_branch
          %130 = sbr.rel (%p128) target = $region20
        $region19: #{tpu_custom_call.1} parent=15 // pred_region
          %s131 = sand.u32 %s39, 1
          %s132 = scalar_lea.sflag [#allocation3], %s131
          %s133 = sand.u32 %s39, 1
          %s134 = smul.addr %s133, 768
          %s135 = scalar_lea.vmem [#allocation2], %s134
          %s136 = smul.u32 48, %s24
          %138 = vsyncadd %s132, 0
          %s139 = smul.addr %s136, 2
          %s140 = smul.addr %s139, 8
          %s141 = scalar_lea.hbm %s0, %s140
          %s142 = sshll.u32 %s141, 4
          %s143 = int_to_ptr.hbm [resolvable:$true] %s142
          %s144 = sshll.u32 %s135, 4
          %s145 = int_to_ptr.vmem [resolvable:$true] %s144
          %150 = dma.hbm_to_vmem [thread:$0]  %s143, 12288, %s145, %s132, 256, 256, 16
        $region20: #{tpu_custom_call.1} parent=15 // pred_fallthru
          _
        // Predicated region
        $region21: #{tpu_custom_call.1} parent=15 // pred_check
          %p151 = pneg %p75
        $region22: #{tpu_custom_call.1} parent=15 // pred_check_branch
          %153 = sbr.rel (%p151) target = $region24
        $region23: #{tpu_custom_call.1} parent=15 // pred_region
          %s154 = sand.u32 %s65, 1
          %s155 = scalar_lea.sflag [#allocation6], %s154
          %s156 = sand.u32 %s65, 1
          %s157 = smul.addr %s156, 768
          %s158 = scalar_lea.vmem [#allocation5], %s157
          %s159 = smul.u32 48, %s25
          %161 = vsyncadd %s155, 0
          %s162 = smul.addr %s159, 2
          %s163 = smul.addr %s162, 8
          %s164 = scalar_lea.hbm %s1, %s163
          %s165 = sshll.u32 %s164, 4
          %s166 = int_to_ptr.hbm [resolvable:$true] %s165
          %s167 = sshll.u32 %s158, 4
          %s168 = int_to_ptr.vmem [resolvable:$true] %s167
          %173 = dma.hbm_to_vmem [thread:$0]  %s166, 12288, %s168, %s155, 256, 256, 16
        $region24: #{tpu_custom_call.1} parent=15 // pred_fallthru
          _
      $region16: #{tpu_custom_call.1} parent=5 // pred_fallthru
        _
      %p174 = scmp.le.s32.totalorder 1, %s17
      %p175 = scmp.lt.s32.totalorder %s17, 5
      %p176 = pnand %p174, %p175
      %p177 = pneg %p176
      // Predicated region
      $region25: #{tpu_custom_call.1} parent=5 // pred_check
        _
      $region26: #{tpu_custom_call.1} parent=5 // pred_check_branch
        %179 = sbr.rel (%p176) target = $region28
      $region27: #{tpu_custom_call.1} parent=5 // pred_region
        %s180 = ssub.s32 %s17, 1
        %s181 = sand.u32 %s42, 1
        %s182 = scalar_lea.sflag [#allocation3], %s181
        %s183 = sand.u32 %s42, 1
        %s184 = smul.addr %s183, 768
        %s185 = scalar_lea.vmem [#allocation2], %s184
        // Predicated region
        $region29: #{tpu_custom_call.1} parent=27 // pred_check
          %p186 = pneg %p55
        $region30: #{tpu_custom_call.1} parent=27 // pred_check_branch
          %188 = sbr.rel (%p186) target = $region32
        $region31: #{tpu_custom_call.1} parent=27 // pred_region
          %190 = dma.done %s182, 12288
        $region32: #{tpu_custom_call.1} parent=27 // pred_fallthru
          _
        %s191 = sand.u32 %s68, 1
        %s192 = scalar_lea.sflag [#allocation6], %s191
        %s193 = sand.u32 %s68, 1
        %s194 = smul.addr %s193, 768
        %s195 = scalar_lea.vmem [#allocation5], %s194
        // Predicated region
        $region33: #{tpu_custom_call.1} parent=27 // pred_check
          %p196 = pneg %p81
        $region34: #{tpu_custom_call.1} parent=27 // pred_check_branch
          %198 = sbr.rel (%p196) target = $region36
        $region35: #{tpu_custom_call.1} parent=27 // pred_region
          %200 = dma.done %s192, 12288
        $region36: #{tpu_custom_call.1} parent=27 // pred_fallthru
          _
        %s201 = sand.u32 %s42, 1
        %s202 = scalar_lea.sflag [#allocation3], %s201
        %s203 = sand.u32 %s42, 1
        %s204 = smul.addr %s203, 768
        %s205 = scalar_lea.vmem [#allocation2], %s204
        %p206 = pneg %p55
        %p207 = pneg %p52
        %s208 = sand.u32 %s68, 1
        %s209 = scalar_lea.sflag [#allocation6], %s208
        %s210 = sand.u32 %s68, 1
        %s211 = smul.addr %s210, 768
        %s212 = scalar_lea.vmem [#allocation5], %s211
        %p213 = pneg %p81
        %p214 = pneg %p78
        %p215 = pneg %p109
        %p216 = pneg %p106
        %s217 = sand.u32 %s96, 1
        %s218 = scalar_lea.sflag [#allocation4], %s217
        %s219 = sand.u32 %s96, 1
        %s220 = smul.addr %s219, 576
        %s221 = scalar_lea.vmem [#allocation7], %s220
        %s222 = smul.u32 48, %s26
        %s223 = smul.u32 48, %s27
        %s224 = smul.u32 48, %s26
        %s225 = smul.u32 3, %s27
        %v226 = vld [vmem:[%s185] sm:$0xff]
        %v227 = vld [vmem:[%s185 + $0x8] sm:$0xff]
        %v228 = vld [vmem:[%s185 + $0x10] sm:$0xff]
        %v229 = vld [vmem:[%s185 + $0x18] sm:$0xff]
        %v230 = vld [vmem:[%s185 + $0x20] sm:$0xff]
        %v231 = vld [vmem:[%s185 + $0x28] sm:$0xff]
        %v232 = vld [vmem:[%s185 + $0x30] sm:$0xff]
        %v233 = vld [vmem:[%s185 + $0x38] sm:$0xff]
        %v234 = vld [vmem:[%s185 + $0x40] sm:$0xff]
        %v235 = vld [vmem:[%s185 + $0x48] sm:$0xff]
        %v236 = vld [vmem:[%s185 + $0x50] sm:$0xff]
        %v237 = vld [vmem:[%s185 + $0x58] sm:$0xff]
        %v238 = vld [vmem:[%s185 + $0x60] sm:$0xff]
        %v239 = vld [vmem:[%s185 + $0x68] sm:$0xff]
        %v240 = vld [vmem:[%s185 + $0x70] sm:$0xff]
        %v241 = vld [vmem:[%s185 + $0x78] sm:$0xff]
        %v242 = vld [vmem:[%s185 + $0x80] sm:$0xff]
        %v243 = vld [vmem:[%s185 + $0x88] sm:$0xff]
        %v244 = vld [vmem:[%s185 + $0x90] sm:$0xff]
        %v245 = vld [vmem:[%s185 + $0x98] sm:$0xff]
        %v246 = vld [vmem:[%s185 + $0xa0] sm:$0xff]
        %v247 = vld [vmem:[%s185 + $0xa8] sm:$0xff]
        %v248 = vld [vmem:[%s185 + $0xb0] sm:$0xff]
        %v249 = vld [vmem:[%s185 + $0xb8] sm:$0xff]
        %v250 = vld [vmem:[%s185 + $0xc0] sm:$0xff]
        %v251 = vld [vmem:[%s185 + $0xc8] sm:$0xff]
        %v252 = vld [vmem:[%s185 + $0xd0] sm:$0xff]
        %v253 = vld [vmem:[%s185 + $0xd8] sm:$0xff]
        %v254 = vld [vmem:[%s185 + $0xe0] sm:$0xff]
        %v255 = vld [vmem:[%s185 + $0xe8] sm:$0xff]
        %v256 = vld [vmem:[%s185 + $0xf0] sm:$0xff]
        %v257 = vld [vmem:[%s185 + $0xf8] sm:$0xff]
        %v258 = vld [vmem:[%s185 + $0x100] sm:$0xff]
        %v259 = vld [vmem:[%s185 + $0x108] sm:$0xff]
        %v260 = vld [vmem:[%s185 + $0x110] sm:$0xff]
        %v261 = vld [vmem:[%s185 + $0x118] sm:$0xff]
        %v262 = vld [vmem:[%s185 + $0x120] sm:$0xff]
        %v263 = vld [vmem:[%s185 + $0x128] sm:$0xff]
        %v264 = vld [vmem:[%s185 + $0x130] sm:$0xff]
        %v265 = vld [vmem:[%s185 + $0x138] sm:$0xff]
        %v266 = vld [vmem:[%s185 + $0x140] sm:$0xff]
        %v267 = vld [vmem:[%s185 + $0x148] sm:$0xff]
        %v268 = vld [vmem:[%s185 + $0x150] sm:$0xff]
        %v269 = vld [vmem:[%s185 + $0x158] sm:$0xff]
        %v270 = vld [vmem:[%s185 + $0x160] sm:$0xff]
        %v271 = vld [vmem:[%s185 + $0x168] sm:$0xff]
        %v272 = vld [vmem:[%s185 + $0x170] sm:$0xff]
        %v273 = vld [vmem:[%s185 + $0x178] sm:$0xff]
        %v274 = vld [vmem:[%s185 + $0x180] sm:$0xff]
        %v275 = vld [vmem:[%s185 + $0x188] sm:$0xff]
        %v276 = vld [vmem:[%s185 + $0x190] sm:$0xff]
        %v277 = vld [vmem:[%s185 + $0x198] sm:$0xff]
        %v278 = vld [vmem:[%s185 + $0x1a0] sm:$0xff]
        %v279 = vld [vmem:[%s185 + $0x1a8] sm:$0xff]
        %v280 = vld [vmem:[%s185 + $0x1b0] sm:$0xff]
        %v281 = vld [vmem:[%s185 + $0x1b8] sm:$0xff]
        %v282 = vld [vmem:[%s185 + $0x1c0] sm:$0xff]
        %v283 = vld [vmem:[%s185 + $0x1c8] sm:$0xff]
        %v284 = vld [vmem:[%s185 + $0x1d0] sm:$0xff]
        %v285 = vld [vmem:[%s185 + $0x1d8] sm:$0xff]
        %v286 = vld [vmem:[%s185 + $0x1e0] sm:$0xff]
        %v287 = vld [vmem:[%s185 + $0x1e8] sm:$0xff]
        %v288 = vld [vmem:[%s185 + $0x1f0] sm:$0xff]
        %v289 = vld [vmem:[%s185 + $0x1f8] sm:$0xff]
        %v290 = vld [vmem:[%s185 + $0x200] sm:$0xff]
        %v291 = vld [vmem:[%s185 + $0x208] sm:$0xff]
        %v292 = vld [vmem:[%s185 + $0x210] sm:$0xff]
        %v293 = vld [vmem:[%s185 + $0x218] sm:$0xff]
        %v294 = vld [vmem:[%s185 + $0x220] sm:$0xff]
        %v295 = vld [vmem:[%s185 + $0x228] sm:$0xff]
        %v296 = vld [vmem:[%s185 + $0x230] sm:$0xff]
        %v297 = vld [vmem:[%s185 + $0x238] sm:$0xff]
        %v298 = vld [vmem:[%s185 + $0x240] sm:$0xff]
        %v299 = vld [vmem:[%s185 + $0x248] sm:$0xff]
        %v300 = vld [vmem:[%s185 + $0x250] sm:$0xff]
        %v301 = vld [vmem:[%s185 + $0x258] sm:$0xff]
        %v302 = vld [vmem:[%s185 + $0x260] sm:$0xff]
        %v303 = vld [vmem:[%s185 + $0x268] sm:$0xff]
        %v304 = vld [vmem:[%s185 + $0x270] sm:$0xff]
        %v305 = vld [vmem:[%s185 + $0x278] sm:$0xff]
        %v306 = vld [vmem:[%s185 + $0x280] sm:$0xff]
        %v307 = vld [vmem:[%s185 + $0x288] sm:$0xff]
        %v308 = vld [vmem:[%s185 + $0x290] sm:$0xff]
        %v309 = vld [vmem:[%s185 + $0x298] sm:$0xff]
        %v310 = vld [vmem:[%s185 + $0x2a0] sm:$0xff]
        %v311 = vld [vmem:[%s185 + $0x2a8] sm:$0xff]
        %v312 = vld [vmem:[%s185 + $0x2b0] sm:$0xff]
        %v313 = vld [vmem:[%s185 + $0x2b8] sm:$0xff]
        %v314 = vld [vmem:[%s185 + $0x2c0] sm:$0xff]
        %v315 = vld [vmem:[%s185 + $0x2c8] sm:$0xff]
        %v316 = vld [vmem:[%s185 + $0x2d0] sm:$0xff]
        %v317 = vld [vmem:[%s185 + $0x2d8] sm:$0xff]
        %v318 = vld [vmem:[%s185 + $0x2e0] sm:$0xff]
        %v319 = vld [vmem:[%s185 + $0x2e8] sm:$0xff]
        %v320 = vld [vmem:[%s185 + $0x2f0] sm:$0xff]
        %v321 = vld [vmem:[%s185 + $0x2f8] sm:$0xff]
        %v322 = vpack.c.bf16 %v228, %v226
        %v323 = vpack.c.bf16 %v229, %v227
        %v324 = vpack.c.bf16 %v232, %v230
        %v325 = vpack.c.bf16 %v233, %v231
        %v326 = vpack.c.bf16 %v236, %v234
        %v327 = vpack.c.bf16 %v237, %v235
        %v328 = vpack.c.bf16 %v240, %v238
        %v329 = vpack.c.bf16 %v241, %v239
        %v330 = vpack.c.bf16 %v244, %v242
        %v331 = vpack.c.bf16 %v245, %v243
        %v332 = vpack.c.bf16 %v248, %v246
        %v333 = vpack.c.bf16 %v249, %v247
        %v334 = vpack.c.bf16 %v252, %v250
        %v335 = vpack.c.bf16 %v253, %v251
        %v336 = vpack.c.bf16 %v256, %v254
        %v337 = vpack.c.bf16 %v257, %v255
        %v338 = vpack.c.bf16 %v260, %v258
        %v339 = vpack.c.bf16 %v261, %v259
        %v340 = vpack.c.bf16 %v264, %v262
        %v341 = vpack.c.bf16 %v265, %v263
        %v342 = vpack.c.bf16 %v268, %v266
        %v343 = vpack.c.bf16 %v269, %v267
        %v344 = vpack.c.bf16 %v272, %v270
        %v345 = vpack.c.bf16 %v273, %v271
        %v346 = vpack.c.bf16 %v276, %v274
        %v347 = vpack.c.bf16 %v277, %v275
        %v348 = vpack.c.bf16 %v280, %v278
        %v349 = vpack.c.bf16 %v281, %v279
        %v350 = vpack.c.bf16 %v284, %v282
        %v351 = vpack.c.bf16 %v285, %v283
        %v352 = vpack.c.bf16 %v288, %v286
        %v353 = vpack.c.bf16 %v289, %v287
        %v354 = vpack.c.bf16 %v292, %v290
        %v355 = vpack.c.bf16 %v293, %v291
        %v356 = vpack.c.bf16 %v296, %v294
        %v357 = vpack.c.bf16 %v297, %v295
        %v358 = vpack.c.bf16 %v300, %v298
        %v359 = vpack.c.bf16 %v301, %v299
        %v360 = vpack.c.bf16 %v304, %v302
        %v361 = vpack.c.bf16 %v305, %v303
        %v362 = vpack.c.bf16 %v308, %v306
        %v363 = vpack.c.bf16 %v309, %v307
        %v364 = vpack.c.bf16 %v312, %v310
        %v365 = vpack.c.bf16 %v313, %v311
        %v366 = vpack.c.bf16 %v316, %v314
        %v367 = vpack.c.bf16 %v317, %v315
        %v368 = vpack.c.bf16 %v320, %v318
        %v369 = vpack.c.bf16 %v321, %v319
        %v370 = vld [vmem:[%s195] sm:$0xff]
        %v371 = vld [vmem:[%s195 + $0x8] sm:$0xff]
        %v372 = vld [vmem:[%s195 + $0x10] sm:$0xff]
        %v373 = vld [vmem:[%s195 + $0x18] sm:$0xff]
        %v374 = vld [vmem:[%s195 + $0x20] sm:$0xff]
        %v375 = vld [vmem:[%s195 + $0x28] sm:$0xff]
        %v376 = vld [vmem:[%s195 + $0x30] sm:$0xff]
        %v377 = vld [vmem:[%s195 + $0x38] sm:$0xff]
        %v378 = vld [vmem:[%s195 + $0x40] sm:$0xff]
        %v379 = vld [vmem:[%s195 + $0x48] sm:$0xff]
        %v380 = vld [vmem:[%s195 + $0x50] sm:$0xff]
        %v381 = vld [vmem:[%s195 + $0x58] sm:$0xff]
        %v382 = vld [vmem:[%s195 + $0x60] sm:$0xff]
        %v383 = vld [vmem:[%s195 + $0x68] sm:$0xff]
        %v384 = vld [vmem:[%s195 + $0x70] sm:$0xff]
        %v385 = vld [vmem:[%s195 + $0x78] sm:$0xff]
        %v386 = vld [vmem:[%s195 + $0x80] sm:$0xff]
        %v387 = vld [vmem:[%s195 + $0x88] sm:$0xff]
        %v388 = vld [vmem:[%s195 + $0x90] sm:$0xff]
        %v389 = vld [vmem:[%s195 + $0x98] sm:$0xff]
        %v390 = vld [vmem:[%s195 + $0xa0] sm:$0xff]
        %v391 = vld [vmem:[%s195 + $0xa8] sm:$0xff]
        %v392 = vld [vmem:[%s195 + $0xb0] sm:$0xff]
        %v393 = vld [vmem:[%s195 + $0xb8] sm:$0xff]
        %v394 = vld [vmem:[%s195 + $0xc0] sm:$0xff]
        %v395 = vld [vmem:[%s195 + $0xc8] sm:$0xff]
        %v396 = vld [vmem:[%s195 + $0xd0] sm:$0xff]
        %v397 = vld [vmem:[%s195 + $0xd8] sm:$0xff]
        %v398 = vld [vmem:[%s195 + $0xe0] sm:$0xff]
        %v399 = vld [vmem:[%s195 + $0xe8] sm:$0xff]
        %v400 = vld [vmem:[%s195 + $0xf0] sm:$0xff]
        %v401 = vld [vmem:[%s195 + $0xf8] sm:$0xff]
        %v402 = vld [vmem:[%s195 + $0x100] sm:$0xff]
        %v403 = vld [vmem:[%s195 + $0x108] sm:$0xff]
        %v404 = vld [vmem:[%s195 + $0x110] sm:$0xff]
        %v405 = vld [vmem:[%s195 + $0x118] sm:$0xff]
        %v406 = vld [vmem:[%s195 + $0x120] sm:$0xff]
        %v407 = vld [vmem:[%s195 + $0x128] sm:$0xff]
        %v408 = vld [vmem:[%s195 + $0x130] sm:$0xff]
        %v409 = vld [vmem:[%s195 + $0x138] sm:$0xff]
        %v410 = vld [vmem:[%s195 + $0x140] sm:$0xff]
        %v411 = vld [vmem:[%s195 + $0x148] sm:$0xff]
        %v412 = vld [vmem:[%s195 + $0x150] sm:$0xff]
        %v413 = vld [vmem:[%s195 + $0x158] sm:$0xff]
        %v414 = vld [vmem:[%s195 + $0x160] sm:$0xff]
        %v415 = vld [vmem:[%s195 + $0x168] sm:$0xff]
        %v416 = vld [vmem:[%s195 + $0x170] sm:$0xff]
        %v417 = vld [vmem:[%s195 + $0x178] sm:$0xff]
        %v418 = vld [vmem:[%s195 + $0x180] sm:$0xff]
        %v419 = vld [vmem:[%s195 + $0x188] sm:$0xff]
        %v420 = vld [vmem:[%s195 + $0x190] sm:$0xff]
        %v421 = vld [vmem:[%s195 + $0x198] sm:$0xff]
        %v422 = vld [vmem:[%s195 + $0x1a0] sm:$0xff]
        %v423 = vld [vmem:[%s195 + $0x1a8] sm:$0xff]
        %v424 = vld [vmem:[%s195 + $0x1b0] sm:$0xff]
        %v425 = vld [vmem:[%s195 + $0x1b8] sm:$0xff]
        %v426 = vld [vmem:[%s195 + $0x1c0] sm:$0xff]
        %v427 = vld [vmem:[%s195 + $0x1c8] sm:$0xff]
        %v428 = vld [vmem:[%s195 + $0x1d0] sm:$0xff]
        %v429 = vld [vmem:[%s195 + $0x1d8] sm:$0xff]
        %v430 = vld [vmem:[%s195 + $0x1e0] sm:$0xff]
        %v431 = vld [vmem:[%s195 + $0x1e8] sm:$0xff]
        %v432 = vld [vmem:[%s195 + $0x1f0] sm:$0xff]
        %v433 = vld [vmem:[%s195 + $0x1f8] sm:$0xff]
        %v434 = vld [vmem:[%s195 + $0x200] sm:$0xff]
        %v435 = vld [vmem:[%s195 + $0x208] sm:$0xff]
        %v436 = vld [vmem:[%s195 + $0x210] sm:$0xff]
        %v437 = vld [vmem:[%s195 + $0x218] sm:$0xff]
        %v438 = vld [vmem:[%s195 + $0x220] sm:$0xff]
        %v439 = vld [vmem:[%s195 + $0x228] sm:$0xff]
        %v440 = vld [vmem:[%s195 + $0x230] sm:$0xff]
        %v441 = vld [vmem:[%s195 + $0x238] sm:$0xff]
        %v442 = vld [vmem:[%s195 + $0x240] sm:$0xff]
        %v443 = vld [vmem:[%s195 + $0x248] sm:$0xff]
        %v444 = vld [vmem:[%s195 + $0x250] sm:$0xff]
        %v445 = vld [vmem:[%s195 + $0x258] sm:$0xff]
        %v446 = vld [vmem:[%s195 + $0x260] sm:$0xff]
        %v447 = vld [vmem:[%s195 + $0x268] sm:$0xff]
        %v448 = vld [vmem:[%s195 + $0x270] sm:$0xff]
        %v449 = vld [vmem:[%s195 + $0x278] sm:$0xff]
        %v450 = vld [vmem:[%s195 + $0x280] sm:$0xff]
        %v451 = vld [vmem:[%s195 + $0x288] sm:$0xff]
        %v452 = vld [vmem:[%s195 + $0x290] sm:$0xff]
        %v453 = vld [vmem:[%s195 + $0x298] sm:$0xff]
        %v454 = vld [vmem:[%s195 + $0x2a0] sm:$0xff]
        %v455 = vld [vmem:[%s195 + $0x2a8] sm:$0xff]
        %v456 = vld [vmem:[%s195 + $0x2b0] sm:$0xff]
        %v457 = vld [vmem:[%s195 + $0x2b8] sm:$0xff]
        %v458 = vld [vmem:[%s195 + $0x2c0] sm:$0xff]
        %v459 = vld [vmem:[%s195 + $0x2c8] sm:$0xff]
        %v460 = vld [vmem:[%s195 + $0x2d0] sm:$0xff]
        %v461 = vld [vmem:[%s195 + $0x2d8] sm:$0xff]
        %v462 = vld [vmem:[%s195 + $0x2e0] sm:$0xff]
        %v463 = vld [vmem:[%s195 + $0x2e8] sm:$0xff]
        %v464 = vld [vmem:[%s195 + $0x2f0] sm:$0xff]
        %v465 = vld [vmem:[%s195 + $0x2f8] sm:$0xff]
        %v466 = vpack.c.bf16 %v372, %v370
        %v467 = vpack.c.bf16 %v373, %v371
        %v468 = vpack.c.bf16 %v376, %v374
        %v469 = vpack.c.bf16 %v377, %v375
        %v470 = vpack.c.bf16 %v380, %v378
        %v471 = vpack.c.bf16 %v381, %v379
        %v472 = vpack.c.bf16 %v384, %v382
        %v473 = vpack.c.bf16 %v385, %v383
        %v474 = vpack.c.bf16 %v388, %v386
        %v475 = vpack.c.bf16 %v389, %v387
        %v476 = vpack.c.bf16 %v392, %v390
        %v477 = vpack.c.bf16 %v393, %v391
        %v478 = vpack.c.bf16 %v396, %v394
        %v479 = vpack.c.bf16 %v397, %v395
        %v480 = vpack.c.bf16 %v400, %v398
        %v481 = vpack.c.bf16 %v401, %v399
        %v482 = vpack.c.bf16 %v404, %v402
        %v483 = vpack.c.bf16 %v405, %v403
        %v484 = vpack.c.bf16 %v408, %v406
        %v485 = vpack.c.bf16 %v409, %v407
        %v486 = vpack.c.bf16 %v412, %v410
        %v487 = vpack.c.bf16 %v413, %v411
        %v488 = vpack.c.bf16 %v416, %v414
        %v489 = vpack.c.bf16 %v417, %v415
        %v490 = vpack.c.bf16 %v420, %v418
        %v491 = vpack.c.bf16 %v421, %v419
        %v492 = vpack.c.bf16 %v424, %v422
        %v493 = vpack.c.bf16 %v425, %v423
        %v494 = vpack.c.bf16 %v428, %v426
        %v495 = vpack.c.bf16 %v429, %v427
        %v496 = vpack.c.bf16 %v432, %v430
        %v497 = vpack.c.bf16 %v433, %v431
        %v498 = vpack.c.bf16 %v436, %v434
        %v499 = vpack.c.bf16 %v437, %v435
        %v500 = vpack.c.bf16 %v440, %v438
        %v501 = vpack.c.bf16 %v441, %v439
        %v502 = vpack.c.bf16 %v444, %v442
        %v503 = vpack.c.bf16 %v445, %v443
        %v504 = vpack.c.bf16 %v448, %v446
        %v505 = vpack.c.bf16 %v449, %v447
        %v506 = vpack.c.bf16 %v452, %v450
        %v507 = vpack.c.bf16 %v453, %v451
        %v508 = vpack.c.bf16 %v456, %v454
        %v509 = vpack.c.bf16 %v457, %v455
        %v510 = vpack.c.bf16 %v460, %v458
        %v511 = vpack.c.bf16 %v461, %v459
        %v512 = vpack.c.bf16 %v464, %v462
        %v513 = vpack.c.bf16 %v465, %v463
        %514 = vmatpush.bf16.xpose.msra.mxu0 %v480
        %515 = vmatpush.bf16.xpose.msra.mxu0 %v478
        %516 = vmatpush.bf16.xpose.msra.mxu0 %v476
        %517 = vmatpush.bf16.xpose.msra.mxu0 %v474
        %518 = vmatpush.bf16.xpose.msra.mxu0 %v472
        %519 = vmatpush.bf16.xpose.msra.mxu0 %v470
        %520 = vmatpush.bf16.xpose.msra.mxu0 %v468
        %521 = vmatpush.bf16.xpose.msra.mxu0 %v466
        %522 = vmatmul.bf16.gmra.mxu0 %v322
        %v523 = vpop.f32.mrf.mxu0
        %v524 = vadd.f32 0.0, %v523
        %v525 = vpop.f32.mrf.mxu0
        %v526 = vadd.f32 0.0, %v525
        %527 = vmatmul.bf16.gmra.mxu0 %v324
        %v528 = vpop.f32.mrf.mxu0
        %v529 = vadd.f32 0.0, %v528
        %v530 = vpop.f32.mrf.mxu0
        %v531 = vadd.f32 0.0, %v530
        %532 = vmatmul.bf16.gmra.mxu0 %v326
        %v533 = vpop.f32.mrf.mxu0
        %v534 = vadd.f32 0.0, %v533
        %v535 = vpop.f32.mrf.mxu0
        %v536 = vadd.f32 0.0, %v535
        %537 = vmatmul.bf16.gmra.mxu0 %v328
        %v538 = vpop.f32.mrf.mxu0
        %v539 = vadd.f32 0.0, %v538
        %v540 = vpop.f32.mrf.mxu0
        %v541 = vadd.f32 0.0, %v540
        %542 = vmatmul.bf16.gmra.mxu0 %v330
        %v543 = vpop.f32.mrf.mxu0
        %v544 = vadd.f32 0.0, %v543
        %v545 = vpop.f32.mrf.mxu0
        %v546 = vadd.f32 0.0, %v545
        %547 = vmatmul.bf16.gmra.mxu0 %v332
        %v548 = vpop.f32.mrf.mxu0
        %v549 = vadd.f32 0.0, %v548
        %v550 = vpop.f32.mrf.mxu0
        %v551 = vadd.f32 0.0, %v550
        %552 = vmatmul.bf16.gmra.mxu0 %v334
        %v553 = vpop.f32.mrf.mxu0
        %v554 = vadd.f32 0.0, %v553
        %v555 = vpop.f32.mrf.mxu0
        %v556 = vadd.f32 0.0, %v555
        %557 = vmatmul.bf16.gmra.mxu0 %v336
        %v558 = vpop.f32.mrf.mxu0
        %v559 = vadd.f32 0.0, %v558
        %v560 = vpop.f32.mrf.mxu0
        %v561 = vadd.f32 0.0, %v560
        %562 = vmatmul.bf16.gmra.mxu0 %v338
        %v563 = vpop.f32.mrf.mxu0
        %v564 = vadd.f32 0.0, %v563
        %v565 = vpop.f32.mrf.mxu0
        %v566 = vadd.f32 0.0, %v565
        %567 = vmatmul.bf16.gmra.mxu0 %v340
        %v568 = vpop.f32.mrf.mxu0
        %v569 = vadd.f32 0.0, %v568
        %v570 = vpop.f32.mrf.mxu0
        %v571 = vadd.f32 0.0, %v570
        %572 = vmatmul.bf16.gmra.mxu0 %v342
        %v573 = vpop.f32.mrf.mxu0
        %v574 = vadd.f32 0.0, %v573
        %v575 = vpop.f32.mrf.mxu0
        %v576 = vadd.f32 0.0, %v575
        %577 = vmatmul.bf16.gmra.mxu0 %v344
        %v578 = vpop.f32.mrf.mxu0
        %v579 = vadd.f32 0.0, %v578
        %v580 = vpop.f32.mrf.mxu0
        %v581 = vadd.f32 0.0, %v580
        %582 = vmatmul.bf16.gmra.mxu0 %v346
        %v583 = vpop.f32.mrf.mxu0
        %v584 = vadd.f32 0.0, %v583
        %v585 = vpop.f32.mrf.mxu0
        %v586 = vadd.f32 0.0, %v585
        %587 = vmatmul.bf16.gmra.mxu0 %v348
        %v588 = vpop.f32.mrf.mxu0
        %v589 = vadd.f32 0.0, %v588
        %v590 = vpop.f32.mrf.mxu0
        %v591 = vadd.f32 0.0, %v590
        %592 = vmatmul.bf16.gmra.mxu0 %v350
        %v593 = vpop.f32.mrf.mxu0
        %v594 = vadd.f32 0.0, %v593
        %v595 = vpop.f32.mrf.mxu0
        %v596 = vadd.f32 0.0, %v595
        %597 = vmatmul.bf16.gmra.mxu0 %v352
        %v598 = vpop.f32.mrf.mxu0
        %v599 = vadd.f32 0.0, %v598
        %v600 = vpop.f32.mrf.mxu0
        %v601 = vadd.f32 0.0, %v600
        %602 = vmatmul.bf16.gmra.mxu0 %v354
        %v603 = vpop.f32.mrf.mxu0
        %v604 = vadd.f32 0.0, %v603
        %v605 = vpop.f32.mrf.mxu0
        %v606 = vadd.f32 0.0, %v605
        %607 = vmatmul.bf16.gmra.mxu0 %v356
        %v608 = vpop.f32.mrf.mxu0
        %v609 = vadd.f32 0.0, %v608
        %v610 = vpop.f32.mrf.mxu0
        %v611 = vadd.f32 0.0, %v610
        %612 = vmatmul.bf16.gmra.mxu0 %v358
        %v613 = vpop.f32.mrf.mxu0
        %v614 = vadd.f32 0.0, %v613
        %v615 = vpop.f32.mrf.mxu0
        %v616 = vadd.f32 0.0, %v615
        %617 = vmatmul.bf16.gmra.mxu0 %v360
        %v618 = vpop.f32.mrf.mxu0
        %v619 = vadd.f32 0.0, %v618
        %v620 = vpop.f32.mrf.mxu0
        %v621 = vadd.f32 0.0, %v620
        %622 = vmatmul.bf16.gmra.mxu0 %v362
        %v623 = vpop.f32.mrf.mxu0
        %v624 = vadd.f32 0.0, %v623
        %v625 = vpop.f32.mrf.mxu0
        %v626 = vadd.f32 0.0, %v625
        %627 = vmatmul.bf16.gmra.mxu0 %v364
        %v628 = vpop.f32.mrf.mxu0
        %v629 = vadd.f32 0.0, %v628
        %v630 = vpop.f32.mrf.mxu0
        %v631 = vadd.f32 0.0, %v630
        %632 = vmatmul.bf16.gmra.mxu0 %v366
        %v633 = vpop.f32.mrf.mxu0
        %v634 = vadd.f32 0.0, %v633
        %v635 = vpop.f32.mrf.mxu0
        %v636 = vadd.f32 0.0, %v635
        %637 = vmatmul.bf16.gmra.mxu0 %v368
        %v638 = vpop.f32.mrf.mxu0
        %v639 = vadd.f32 0.0, %v638
        %v640 = vpop.f32.mrf.mxu0
        %v641 = vadd.f32 0.0, %v640
        %642 = vdwg.mxu0
        %643 = vmatpush.bf16.xpose.msra.mxu0 %v481
        %644 = vmatpush.bf16.xpose.msra.mxu0 %v479
        %645 = vmatpush.bf16.xpose.msra.mxu0 %v477
        %646 = vmatpush.bf16.xpose.msra.mxu0 %v475
        %647 = vmatpush.bf16.xpose.msra.mxu0 %v473
        %648 = vmatpush.bf16.xpose.msra.mxu0 %v471
        %649 = vmatpush.bf16.xpose.msra.mxu0 %v469
        %650 = vmatpush.bf16.xpose.msra.mxu0 %v467
        %651 = vmatmul.bf16.gmra.mxu0 %v323
        %v652 = vpop.f32.mrf.mxu0
        %v653 = vadd.f32 %v524, %v652
        %v654 = vpop.f32.mrf.mxu0
        %v655 = vadd.f32 %v526, %v654
        %656 = vmatmul.bf16.gmra.mxu0 %v325
        %v657 = vpop.f32.mrf.mxu0
        %v658 = vadd.f32 %v529, %v657
        %v659 = vpop.f32.mrf.mxu0
        %v660 = vadd.f32 %v531, %v659
        %661 = vmatmul.bf16.gmra.mxu0 %v327
        %v662 = vpop.f32.mrf.mxu0
        %v663 = vadd.f32 %v534, %v662
        %v664 = vpop.f32.mrf.mxu0
        %v665 = vadd.f32 %v536, %v664
        %666 = vmatmul.bf16.gmra.mxu0 %v329
        %v667 = vpop.f32.mrf.mxu0
        %v668 = vadd.f32 %v539, %v667
        %v669 = vpop.f32.mrf.mxu0
        %v670 = vadd.f32 %v541, %v669
        %671 = vmatmul.bf16.gmra.mxu0 %v331
        %v672 = vpop.f32.mrf.mxu0
        %v673 = vadd.f32 %v544, %v672
        %v674 = vpop.f32.mrf.mxu0
        %v675 = vadd.f32 %v546, %v674
        %676 = vmatmul.bf16.gmra.mxu0 %v333
        %v677 = vpop.f32.mrf.mxu0
        %v678 = vadd.f32 %v549, %v677
        %v679 = vpop.f32.mrf.mxu0
        %v680 = vadd.f32 %v551, %v679
        %681 = vmatmul.bf16.gmra.mxu0 %v335
        %v682 = vpop.f32.mrf.mxu0
        %v683 = vadd.f32 %v554, %v682
        %v684 = vpop.f32.mrf.mxu0
        %v685 = vadd.f32 %v556, %v684
        %686 = vmatmul.bf16.gmra.mxu0 %v337
        %v687 = vpop.f32.mrf.mxu0
        %v688 = vadd.f32 %v559, %v687
        %v689 = vpop.f32.mrf.mxu0
        %v690 = vadd.f32 %v561, %v689
        %691 = vmatmul.bf16.gmra.mxu0 %v339
        %v692 = vpop.f32.mrf.mxu0
        %v693 = vadd.f32 %v564, %v692
        %v694 = vpop.f32.mrf.mxu0
        %v695 = vadd.f32 %v566, %v694
        %696 = vmatmul.bf16.gmra.mxu0 %v341
        %v697 = vpop.f32.mrf.mxu0
        %v698 = vadd.f32 %v569, %v697
        %v699 = vpop.f32.mrf.mxu0
        %v700 = vadd.f32 %v571, %v699
        %701 = vmatmul.bf16.gmra.mxu0 %v343
        %v702 = vpop.f32.mrf.mxu0
        %v703 = vadd.f32 %v574, %v702
        %v704 = vpop.f32.mrf.mxu0
        %v705 = vadd.f32 %v576, %v704
        %706 = vmatmul.bf16.gmra.mxu0 %v345
        %v707 = vpop.f32.mrf.mxu0
        %v708 = vadd.f32 %v579, %v707
        %v709 = vpop.f32.mrf.mxu0
        %v710 = vadd.f32 %v581, %v709
        %711 = vmatmul.bf16.gmra.mxu0 %v347
        %v712 = vpop.f32.mrf.mxu0
        %v713 = vadd.f32 %v584, %v712
        %v714 = vpop.f32.mrf.mxu0
        %v715 = vadd.f32 %v586, %v714
        %716 = vmatmul.bf16.gmra.mxu0 %v349
        %v717 = vpop.f32.mrf.mxu0
        %v718 = vadd.f32 %v589, %v717
        %v719 = vpop.f32.mrf.mxu0
        %v720 = vadd.f32 %v591, %v719
        %721 = vmatmul.bf16.gmra.mxu0 %v351
        %v722 = vpop.f32.mrf.mxu0
        %v723 = vadd.f32 %v594, %v722
        %v724 = vpop.f32.mrf.mxu0
        %v725 = vadd.f32 %v596, %v724
        %726 = vmatmul.bf16.gmra.mxu0 %v353
        %v727 = vpop.f32.mrf.mxu0
        %v728 = vadd.f32 %v599, %v727
        %v729 = vpop.f32.mrf.mxu0
        %v730 = vadd.f32 %v601, %v729
        %731 = vmatmul.bf16.gmra.mxu0 %v355
        %v732 = vpop.f32.mrf.mxu0
        %v733 = vadd.f32 %v604, %v732
        %v734 = vpop.f32.mrf.mxu0
        %v735 = vadd.f32 %v606, %v734
        %736 = vmatmul.bf16.gmra.mxu0 %v357
        %v737 = vpop.f32.mrf.mxu0
        %v738 = vadd.f32 %v609, %v737
        %v739 = vpop.f32.mrf.mxu0
        %v740 = vadd.f32 %v611, %v739
        %741 = vmatmul.bf16.gmra.mxu0 %v359
        %v742 = vpop.f32.mrf.mxu0
        %v743 = vadd.f32 %v614, %v742
        %v744 = vpop.f32.mrf.mxu0
        %v745 = vadd.f32 %v616, %v744
        %746 = vmatmul.bf16.gmra.mxu0 %v361
        %v747 = vpop.f32.mrf.mxu0
        %v748 = vadd.f32 %v619, %v747
        %v749 = vpop.f32.mrf.mxu0
        %v750 = vadd.f32 %v621, %v749
        %751 = vmatmul.bf16.gmra.mxu0 %v363
        %v752 = vpop.f32.mrf.mxu0
        %v753 = vadd.f32 %v624, %v752
        %v754 = vpop.f32.mrf.mxu0
        %v755 = vadd.f32 %v626, %v754
        %756 = vmatmul.bf16.gmra.mxu0 %v365
        %v757 = vpop.f32.mrf.mxu0
        %v758 = vadd.f32 %v629, %v757
        %v759 = vpop.f32.mrf.mxu0
        %v760 = vadd.f32 %v631, %v759
        %761 = vmatmul.bf16.gmra.mxu0 %v367
        %v762 = vpop.f32.mrf.mxu0
        %v763 = vadd.f32 %v634, %v762
        %v764 = vpop.f32.mrf.mxu0
        %v765 = vadd.f32 %v636, %v764
        %766 = vmatmul.bf16.gmra.mxu0 %v369
        %v767 = vpop.f32.mrf.mxu0
        %v768 = vadd.f32 %v639, %v767
        %v769 = vpop.f32.mrf.mxu0
        %v770 = vadd.f32 %v641, %v769
        %771 = vdwg.mxu0
        %772 = vmatpush.bf16.xpose.msra.mxu0 %v496
        %773 = vmatpush.bf16.xpose.msra.mxu0 %v494
        %774 = vmatpush.bf16.xpose.msra.mxu0 %v492
        %775 = vmatpush.bf16.xpose.msra.mxu0 %v490
        %776 = vmatpush.bf16.xpose.msra.mxu0 %v488
        %777 = vmatpush.bf16.xpose.msra.mxu0 %v486
        %778 = vmatpush.bf16.xpose.msra.mxu0 %v484
        %779 = vmatpush.bf16.xpose.msra.mxu0 %v482
        %780 = vmatmul.bf16.gmra.mxu0 %v322
        %v781 = vpop.f32.mrf.mxu0
        %v782 = vadd.f32 0.0, %v781
        %v783 = vpop.f32.mrf.mxu0
        %v784 = vadd.f32 0.0, %v783
        %785 = vmatmul.bf16.gmra.mxu0 %v324
        %v786 = vpop.f32.mrf.mxu0
        %v787 = vadd.f32 0.0, %v786
        %v788 = vpop.f32.mrf.mxu0
        %v789 = vadd.f32 0.0, %v788
        %790 = vmatmul.bf16.gmra.mxu0 %v326
        %v791 = vpop.f32.mrf.mxu0
        %v792 = vadd.f32 0.0, %v791
        %v793 = vpop.f32.mrf.mxu0
        %v794 = vadd.f32 0.0, %v793
        %795 = vmatmul.bf16.gmra.mxu0 %v328
        %v796 = vpop.f32.mrf.mxu0
        %v797 = vadd.f32 0.0, %v796
        %v798 = vpop.f32.mrf.mxu0
        %v799 = vadd.f32 0.0, %v798
        %800 = vmatmul.bf16.gmra.mxu0 %v330
        %v801 = vpop.f32.mrf.mxu0
        %v802 = vadd.f32 0.0, %v801
        %v803 = vpop.f32.mrf.mxu0
        %v804 = vadd.f32 0.0, %v803
        %805 = vmatmul.bf16.gmra.mxu0 %v332
        %v806 = vpop.f32.mrf.mxu0
        %v807 = vadd.f32 0.0, %v806
        %v808 = vpop.f32.mrf.mxu0
        %v809 = vadd.f32 0.0, %v808
        %810 = vmatmul.bf16.gmra.mxu0 %v334
        %v811 = vpop.f32.mrf.mxu0
        %v812 = vadd.f32 0.0, %v811
        %v813 = vpop.f32.mrf.mxu0
        %v814 = vadd.f32 0.0, %v813
        %815 = vmatmul.bf16.gmra.mxu0 %v336
        %v816 = vpop.f32.mrf.mxu0
        %v817 = vadd.f32 0.0, %v816
        %v818 = vpop.f32.mrf.mxu0
        %v819 = vadd.f32 0.0, %v818
        %820 = vmatmul.bf16.gmra.mxu0 %v338
        %v821 = vpop.f32.mrf.mxu0
        %v822 = vadd.f32 0.0, %v821
        %v823 = vpop.f32.mrf.mxu0
        %v824 = vadd.f32 0.0, %v823
        %825 = vmatmul.bf16.gmra.mxu0 %v340
        %v826 = vpop.f32.mrf.mxu0
        %v827 = vadd.f32 0.0, %v826
        %v828 = vpop.f32.mrf.mxu0
        %v829 = vadd.f32 0.0, %v828
        %830 = vmatmul.bf16.gmra.mxu0 %v342
        %v831 = vpop.f32.mrf.mxu0
        %v832 = vadd.f32 0.0, %v831
        %v833 = vpop.f32.mrf.mxu0
        %v834 = vadd.f32 0.0, %v833
        %835 = vmatmul.bf16.gmra.mxu0 %v344
        %v836 = vpop.f32.mrf.mxu0
        %v837 = vadd.f32 0.0, %v836
        %v838 = vpop.f32.mrf.mxu0
        %v839 = vadd.f32 0.0, %v838
        %840 = vmatmul.bf16.gmra.mxu0 %v346
        %v841 = vpop.f32.mrf.mxu0
        %v842 = vadd.f32 0.0, %v841
        %v843 = vpop.f32.mrf.mxu0
        %v844 = vadd.f32 0.0, %v843
        %845 = vmatmul.bf16.gmra.mxu0 %v348
        %v846 = vpop.f32.mrf.mxu0
        %v847 = vadd.f32 0.0, %v846
        %v848 = vpop.f32.mrf.mxu0
        %v849 = vadd.f32 0.0, %v848
        %850 = vmatmul.bf16.gmra.mxu0 %v350
        %v851 = vpop.f32.mrf.mxu0
        %v852 = vadd.f32 0.0, %v851
        %v853 = vpop.f32.mrf.mxu0
        %v854 = vadd.f32 0.0, %v853
        %855 = vmatmul.bf16.gmra.mxu0 %v352
        %v856 = vpop.f32.mrf.mxu0
        %v857 = vadd.f32 0.0, %v856
        %v858 = vpop.f32.mrf.mxu0
        %v859 = vadd.f32 0.0, %v858
        %860 = vmatmul.bf16.gmra.mxu0 %v354
        %v861 = vpop.f32.mrf.mxu0
        %v862 = vadd.f32 0.0, %v861
        %v863 = vpop.f32.mrf.mxu0
        %v864 = vadd.f32 0.0, %v863
        %865 = vmatmul.bf16.gmra.mxu0 %v356
        %v866 = vpop.f32.mrf.mxu0
        %v867 = vadd.f32 0.0, %v866
        %v868 = vpop.f32.mrf.mxu0
        %v869 = vadd.f32 0.0, %v868
        %870 = vmatmul.bf16.gmra.mxu0 %v358
        %v871 = vpop.f32.mrf.mxu0
        %v872 = vadd.f32 0.0, %v871
        %v873 = vpop.f32.mrf.mxu0
        %v874 = vadd.f32 0.0, %v873
        %875 = vmatmul.bf16.gmra.mxu0 %v360
        %v876 = vpop.f32.mrf.mxu0
        %v877 = vadd.f32 0.0, %v876
        %v878 = vpop.f32.mrf.mxu0
        %v879 = vadd.f32 0.0, %v878
        %880 = vmatmul.bf16.gmra.mxu0 %v362
        %v881 = vpop.f32.mrf.mxu0
        %v882 = vadd.f32 0.0, %v881
        %v883 = vpop.f32.mrf.mxu0
        %v884 = vadd.f32 0.0, %v883
        %885 = vmatmul.bf16.gmra.mxu0 %v364
        %v886 = vpop.f32.mrf.mxu0
        %v887 = vadd.f32 0.0, %v886
        %v888 = vpop.f32.mrf.mxu0
        %v889 = vadd.f32 0.0, %v888
        %890 = vmatmul.bf16.gmra.mxu0 %v366
        %v891 = vpop.f32.mrf.mxu0
        %v892 = vadd.f32 0.0, %v891
        %v893 = vpop.f32.mrf.mxu0
        %v894 = vadd.f32 0.0, %v893
        %895 = vmatmul.bf16.gmra.mxu0 %v368
        %v896 = vpop.f32.mrf.mxu0
        %v897 = vadd.f32 0.0, %v896
        %v898 = vpop.f32.mrf.mxu0
        %v899 = vadd.f32 0.0, %v898
        %900 = vdwg.mxu0
        %901 = vmatpush.bf16.xpose.msra.mxu0 %v497
        %902 = vmatpush.bf16.xpose.msra.mxu0 %v495
        %903 = vmatpush.bf16.xpose.msra.mxu0 %v493
        %904 = vmatpush.bf16.xpose.msra.mxu0 %v491
        %905 = vmatpush.bf16.xpose.msra.mxu0 %v489
        %906 = vmatpush.bf16.xpose.msra.mxu0 %v487
        %907 = vmatpush.bf16.xpose.msra.mxu0 %v485
        %908 = vmatpush.bf16.xpose.msra.mxu0 %v483
        %909 = vmatmul.bf16.gmra.mxu0 %v323
        %v910 = vpop.f32.mrf.mxu0
        %v911 = vadd.f32 %v782, %v910
        %v912 = vpop.f32.mrf.mxu0
        %v913 = vadd.f32 %v784, %v912
        %914 = vmatmul.bf16.gmra.mxu0 %v325
        %v915 = vpop.f32.mrf.mxu0
        %v916 = vadd.f32 %v787, %v915
        %v917 = vpop.f32.mrf.mxu0
        %v918 = vadd.f32 %v789, %v917
        %919 = vmatmul.bf16.gmra.mxu0 %v327
        %v920 = vpop.f32.mrf.mxu0
        %v921 = vadd.f32 %v792, %v920
        %v922 = vpop.f32.mrf.mxu0
        %v923 = vadd.f32 %v794, %v922
        %924 = vmatmul.bf16.gmra.mxu0 %v329
        %v925 = vpop.f32.mrf.mxu0
        %v926 = vadd.f32 %v797, %v925
        %v927 = vpop.f32.mrf.mxu0
        %v928 = vadd.f32 %v799, %v927
        %929 = vmatmul.bf16.gmra.mxu0 %v331
        %v930 = vpop.f32.mrf.mxu0
        %v931 = vadd.f32 %v802, %v930
        %v932 = vpop.f32.mrf.mxu0
        %v933 = vadd.f32 %v804, %v932
        %934 = vmatmul.bf16.gmra.mxu0 %v333
        %v935 = vpop.f32.mrf.mxu0
        %v936 = vadd.f32 %v807, %v935
        %v937 = vpop.f32.mrf.mxu0
        %v938 = vadd.f32 %v809, %v937
        %939 = vmatmul.bf16.gmra.mxu0 %v335
        %v940 = vpop.f32.mrf.mxu0
        %v941 = vadd.f32 %v812, %v940
        %v942 = vpop.f32.mrf.mxu0
        %v943 = vadd.f32 %v814, %v942
        %944 = vmatmul.bf16.gmra.mxu0 %v337
        %v945 = vpop.f32.mrf.mxu0
        %v946 = vadd.f32 %v817, %v945
        %v947 = vpop.f32.mrf.mxu0
        %v948 = vadd.f32 %v819, %v947
        %949 = vmatmul.bf16.gmra.mxu0 %v339
        %v950 = vpop.f32.mrf.mxu0
        %v951 = vadd.f32 %v822, %v950
        %v952 = vpop.f32.mrf.mxu0
        %v953 = vadd.f32 %v824, %v952
        %954 = vmatmul.bf16.gmra.mxu0 %v341
        %v955 = vpop.f32.mrf.mxu0
        %v956 = vadd.f32 %v827, %v955
        %v957 = vpop.f32.mrf.mxu0
        %v958 = vadd.f32 %v829, %v957
        %959 = vmatmul.bf16.gmra.mxu0 %v343
        %v960 = vpop.f32.mrf.mxu0
        %v961 = vadd.f32 %v832, %v960
        %v962 = vpop.f32.mrf.mxu0
        %v963 = vadd.f32 %v834, %v962
        %964 = vmatmul.bf16.gmra.mxu0 %v345
        %v965 = vpop.f32.mrf.mxu0
        %v966 = vadd.f32 %v837, %v965
        %v967 = vpop.f32.mrf.mxu0
        %v968 = vadd.f32 %v839, %v967
        %969 = vmatmul.bf16.gmra.mxu0 %v347
        %v970 = vpop.f32.mrf.mxu0
        %v971 = vadd.f32 %v842, %v970
        %v972 = vpop.f32.mrf.mxu0
        %v973 = vadd.f32 %v844, %v972
        %974 = vmatmul.bf16.gmra.mxu0 %v349
        %v975 = vpop.f32.mrf.mxu0
        %v976 = vadd.f32 %v847, %v975
        %v977 = vpop.f32.mrf.mxu0
        %v978 = vadd.f32 %v849, %v977
        %979 = vmatmul.bf16.gmra.mxu0 %v351
        %v980 = vpop.f32.mrf.mxu0
        %v981 = vadd.f32 %v852, %v980
        %v982 = vpop.f32.mrf.mxu0
        %v983 = vadd.f32 %v854, %v982
        %984 = vmatmul.bf16.gmra.mxu0 %v353
        %v985 = vpop.f32.mrf.mxu0
        %v986 = vadd.f32 %v857, %v985
        %v987 = vpop.f32.mrf.mxu0
        %v988 = vadd.f32 %v859, %v987
        %989 = vmatmul.bf16.gmra.mxu0 %v355
        %v990 = vpop.f32.mrf.mxu0
        %v991 = vadd.f32 %v862, %v990
        %v992 = vpop.f32.mrf.mxu0
        %v993 = vadd.f32 %v864, %v992
        %994 = vmatmul.bf16.gmra.mxu0 %v357
        %v995 = vpop.f32.mrf.mxu0
        %v996 = vadd.f32 %v867, %v995
        %v997 = vpop.f32.mrf.mxu0
        %v998 = vadd.f32 %v869, %v997
        %999 = vmatmul.bf16.gmra.mxu0 %v359
        %v1000 = vpop.f32.mrf.mxu0
        %v1001 = vadd.f32 %v872, %v1000
        %v1002 = vpop.f32.mrf.mxu0
        %v1003 = vadd.f32 %v874, %v1002
        %1004 = vmatmul.bf16.gmra.mxu0 %v361
        %v1005 = vpop.f32.mrf.mxu0
        %v1006 = vadd.f32 %v877, %v1005
        %v1007 = vpop.f32.mrf.mxu0
        %v1008 = vadd.f32 %v879, %v1007
        %1009 = vmatmul.bf16.gmra.mxu0 %v363
        %v1010 = vpop.f32.mrf.mxu0
        %v1011 = vadd.f32 %v882, %v1010
        %v1012 = vpop.f32.mrf.mxu0
        %v1013 = vadd.f32 %v884, %v1012
        %1014 = vmatmul.bf16.gmra.mxu0 %v365
        %v1015 = vpop.f32.mrf.mxu0
        %v1016 = vadd.f32 %v887, %v1015
        %v1017 = vpop.f32.mrf.mxu0
        %v1018 = vadd.f32 %v889, %v1017
        %1019 = vmatmul.bf16.gmra.mxu0 %v367
        %v1020 = vpop.f32.mrf.mxu0
        %v1021 = vadd.f32 %v892, %v1020
        %v1022 = vpop.f32.mrf.mxu0
        %v1023 = vadd.f32 %v894, %v1022
        %1024 = vmatmul.bf16.gmra.mxu0 %v369
        %v1025 = vpop.f32.mrf.mxu0
        %v1026 = vadd.f32 %v897, %v1025
        %v1027 = vpop.f32.mrf.mxu0
        %v1028 = vadd.f32 %v899, %v1027
        %1029 = vdwg.mxu0
        %1030 = vmatpush.bf16.xpose.msra.mxu0 %v512
        %1031 = vmatpush.bf16.xpose.msra.mxu0 %v510
        %1032 = vmatpush.bf16.xpose.msra.mxu0 %v508
        %1033 = vmatpush.bf16.xpose.msra.mxu0 %v506
        %1034 = vmatpush.bf16.xpose.msra.mxu0 %v504
        %1035 = vmatpush.bf16.xpose.msra.mxu0 %v502
        %1036 = vmatpush.bf16.xpose.msra.mxu0 %v500
        %1037 = vmatpush.bf16.xpose.msra.mxu0 %v498
        %1038 = vmatmul.bf16.gmra.mxu0 %v322
        %v1039 = vpop.f32.mrf.mxu0
        %v1040 = vadd.f32 0.0, %v1039
        %v1041 = vpop.f32.mrf.mxu0
        %v1042 = vadd.f32 0.0, %v1041
        %1043 = vmatmul.bf16.gmra.mxu0 %v324
        %v1044 = vpop.f32.mrf.mxu0
        %v1045 = vadd.f32 0.0, %v1044
        %v1046 = vpop.f32.mrf.mxu0
        %v1047 = vadd.f32 0.0, %v1046
        %1048 = vmatmul.bf16.gmra.mxu0 %v326
        %v1049 = vpop.f32.mrf.mxu0
        %v1050 = vadd.f32 0.0, %v1049
        %v1051 = vpop.f32.mrf.mxu0
        %v1052 = vadd.f32 0.0, %v1051
        %1053 = vmatmul.bf16.gmra.mxu0 %v328
        %v1054 = vpop.f32.mrf.mxu0
        %v1055 = vadd.f32 0.0, %v1054
        %v1056 = vpop.f32.mrf.mxu0
        %v1057 = vadd.f32 0.0, %v1056
        %1058 = vmatmul.bf16.gmra.mxu0 %v330
        %v1059 = vpop.f32.mrf.mxu0
        %v1060 = vadd.f32 0.0, %v1059
        %v1061 = vpop.f32.mrf.mxu0
        %v1062 = vadd.f32 0.0, %v1061
        %1063 = vmatmul.bf16.gmra.mxu0 %v332
        %v1064 = vpop.f32.mrf.mxu0
        %v1065 = vadd.f32 0.0, %v1064
        %v1066 = vpop.f32.mrf.mxu0
        %v1067 = vadd.f32 0.0, %v1066
        %1068 = vmatmul.bf16.gmra.mxu0 %v334
        %v1069 = vpop.f32.mrf.mxu0
        %v1070 = vadd.f32 0.0, %v1069
        %v1071 = vpop.f32.mrf.mxu0
        %v1072 = vadd.f32 0.0, %v1071
        %1073 = vmatmul.bf16.gmra.mxu0 %v336
        %v1074 = vpop.f32.mrf.mxu0
        %v1075 = vadd.f32 0.0, %v1074
        %v1076 = vpop.f32.mrf.mxu0
        %v1077 = vadd.f32 0.0, %v1076
        %1078 = vmatmul.bf16.gmra.mxu0 %v338
        %v1079 = vpop.f32.mrf.mxu0
        %v1080 = vadd.f32 0.0, %v1079
        %v1081 = vpop.f32.mrf.mxu0
        %v1082 = vadd.f32 0.0, %v1081
        %1083 = vmatmul.bf16.gmra.mxu0 %v340
        %v1084 = vpop.f32.mrf.mxu0
        %v1085 = vadd.f32 0.0, %v1084
        %v1086 = vpop.f32.mrf.mxu0
        %v1087 = vadd.f32 0.0, %v1086
        %1088 = vmatmul.bf16.gmra.mxu0 %v342
        %v1089 = vpop.f32.mrf.mxu0
        %v1090 = vadd.f32 0.0, %v1089
        %v1091 = vpop.f32.mrf.mxu0
        %v1092 = vadd.f32 0.0, %v1091
        %1093 = vmatmul.bf16.gmra.mxu0 %v344
        %v1094 = vpop.f32.mrf.mxu0
        %v1095 = vadd.f32 0.0, %v1094
        %v1096 = vpop.f32.mrf.mxu0
        %v1097 = vadd.f32 0.0, %v1096
        %1098 = vmatmul.bf16.gmra.mxu0 %v346
        %v1099 = vpop.f32.mrf.mxu0
        %v1100 = vadd.f32 0.0, %v1099
        %v1101 = vpop.f32.mrf.mxu0
        %v1102 = vadd.f32 0.0, %v1101
        %1103 = vmatmul.bf16.gmra.mxu0 %v348
        %v1104 = vpop.f32.mrf.mxu0
        %v1105 = vadd.f32 0.0, %v1104
        %v1106 = vpop.f32.mrf.mxu0
        %v1107 = vadd.f32 0.0, %v1106
        %1108 = vmatmul.bf16.gmra.mxu0 %v350
        %v1109 = vpop.f32.mrf.mxu0
        %v1110 = vadd.f32 0.0, %v1109
        %v1111 = vpop.f32.mrf.mxu0
        %v1112 = vadd.f32 0.0, %v1111
        %1113 = vmatmul.bf16.gmra.mxu0 %v352
        %v1114 = vpop.f32.mrf.mxu0
        %v1115 = vadd.f32 0.0, %v1114
        %v1116 = vpop.f32.mrf.mxu0
        %v1117 = vadd.f32 0.0, %v1116
        %1118 = vmatmul.bf16.gmra.mxu0 %v354
        %v1119 = vpop.f32.mrf.mxu0
        %v1120 = vadd.f32 0.0, %v1119
        %v1121 = vpop.f32.mrf.mxu0
        %v1122 = vadd.f32 0.0, %v1121
        %1123 = vmatmul.bf16.gmra.mxu0 %v356
        %v1124 = vpop.f32.mrf.mxu0
        %v1125 = vadd.f32 0.0, %v1124
        %v1126 = vpop.f32.mrf.mxu0
        %v1127 = vadd.f32 0.0, %v1126
        %1128 = vmatmul.bf16.gmra.mxu0 %v358
        %v1129 = vpop.f32.mrf.mxu0
        %v1130 = vadd.f32 0.0, %v1129
        %v1131 = vpop.f32.mrf.mxu0
        %v1132 = vadd.f32 0.0, %v1131
        %1133 = vmatmul.bf16.gmra.mxu0 %v360
        %v1134 = vpop.f32.mrf.mxu0
        %v1135 = vadd.f32 0.0, %v1134
        %v1136 = vpop.f32.mrf.mxu0
        %v1137 = vadd.f32 0.0, %v1136
        %1138 = vmatmul.bf16.gmra.mxu0 %v362
        %v1139 = vpop.f32.mrf.mxu0
        %v1140 = vadd.f32 0.0, %v1139
        %v1141 = vpop.f32.mrf.mxu0
        %v1142 = vadd.f32 0.0, %v1141
        %1143 = vmatmul.bf16.gmra.mxu0 %v364
        %v1144 = vpop.f32.mrf.mxu0
        %v1145 = vadd.f32 0.0, %v1144
        %v1146 = vpop.f32.mrf.mxu0
        %v1147 = vadd.f32 0.0, %v1146
        %1148 = vmatmul.bf16.gmra.mxu0 %v366
        %v1149 = vpop.f32.mrf.mxu0
        %v1150 = vadd.f32 0.0, %v1149
        %v1151 = vpop.f32.mrf.mxu0
        %v1152 = vadd.f32 0.0, %v1151
        %1153 = vmatmul.bf16.gmra.mxu0 %v368
        %v1154 = vpop.f32.mrf.mxu0
        %v1155 = vadd.f32 0.0, %v1154
        %v1156 = vpop.f32.mrf.mxu0
        %v1157 = vadd.f32 0.0, %v1156
        %1158 = vdwg.mxu0
        %1159 = vmatpush.bf16.xpose.msra.mxu0 %v513
        %1160 = vmatpush.bf16.xpose.msra.mxu0 %v511
        %1161 = vmatpush.bf16.xpose.msra.mxu0 %v509
        %1162 = vmatpush.bf16.xpose.msra.mxu0 %v507
        %1163 = vmatpush.bf16.xpose.msra.mxu0 %v505
        %1164 = vmatpush.bf16.xpose.msra.mxu0 %v503
        %1165 = vmatpush.bf16.xpose.msra.mxu0 %v501
        %1166 = vmatpush.bf16.xpose.msra.mxu0 %v499
        %1167 = vmatmul.bf16.gmra.mxu0 %v323
        %v1168 = vpop.f32.mrf.mxu0
        %v1169 = vadd.f32 %v1040, %v1168
        %v1170 = vpop.f32.mrf.mxu0
        %v1171 = vadd.f32 %v1042, %v1170
        %1172 = vmatmul.bf16.gmra.mxu0 %v325
        %v1173 = vpop.f32.mrf.mxu0
        %v1174 = vadd.f32 %v1045, %v1173
        %v1175 = vpop.f32.mrf.mxu0
        %v1176 = vadd.f32 %v1047, %v1175
        %1177 = vmatmul.bf16.gmra.mxu0 %v327
        %v1178 = vpop.f32.mrf.mxu0
        %v1179 = vadd.f32 %v1050, %v1178
        %v1180 = vpop.f32.mrf.mxu0
        %v1181 = vadd.f32 %v1052, %v1180
        %1182 = vmatmul.bf16.gmra.mxu0 %v329
        %v1183 = vpop.f32.mrf.mxu0
        %v1184 = vadd.f32 %v1055, %v1183
        %v1185 = vpop.f32.mrf.mxu0
        %v1186 = vadd.f32 %v1057, %v1185
        %1187 = vmatmul.bf16.gmra.mxu0 %v331
        %v1188 = vpop.f32.mrf.mxu0
        %v1189 = vadd.f32 %v1060, %v1188
        %v1190 = vpop.f32.mrf.mxu0
        %v1191 = vadd.f32 %v1062, %v1190
        %1192 = vmatmul.bf16.gmra.mxu0 %v333
        %v1193 = vpop.f32.mrf.mxu0
        %v1194 = vadd.f32 %v1065, %v1193
        %v1195 = vpop.f32.mrf.mxu0
        %v1196 = vadd.f32 %v1067, %v1195
        %1197 = vmatmul.bf16.gmra.mxu0 %v335
        %v1198 = vpop.f32.mrf.mxu0
        %v1199 = vadd.f32 %v1070, %v1198
        %v1200 = vpop.f32.mrf.mxu0
        %v1201 = vadd.f32 %v1072, %v1200
        %1202 = vmatmul.bf16.gmra.mxu0 %v337
        %v1203 = vpop.f32.mrf.mxu0
        %v1204 = vadd.f32 %v1075, %v1203
        %v1205 = vpop.f32.mrf.mxu0
        %v1206 = vadd.f32 %v1077, %v1205
        %1207 = vmatmul.bf16.gmra.mxu0 %v339
        %v1208 = vpop.f32.mrf.mxu0
        %v1209 = vadd.f32 %v1080, %v1208
        %v1210 = vpop.f32.mrf.mxu0
        %v1211 = vadd.f32 %v1082, %v1210
        %1212 = vmatmul.bf16.gmra.mxu0 %v341
        %v1213 = vpop.f32.mrf.mxu0
        %v1214 = vadd.f32 %v1085, %v1213
        %v1215 = vpop.f32.mrf.mxu0
        %v1216 = vadd.f32 %v1087, %v1215
        %1217 = vmatmul.bf16.gmra.mxu0 %v343
        %v1218 = vpop.f32.mrf.mxu0
        %v1219 = vadd.f32 %v1090, %v1218
        %v1220 = vpop.f32.mrf.mxu0
        %v1221 = vadd.f32 %v1092, %v1220
        %1222 = vmatmul.bf16.gmra.mxu0 %v345
        %v1223 = vpop.f32.mrf.mxu0
        %v1224 = vadd.f32 %v1095, %v1223
        %v1225 = vpop.f32.mrf.mxu0
        %v1226 = vadd.f32 %v1097, %v1225
        %1227 = vmatmul.bf16.gmra.mxu0 %v347
        %v1228 = vpop.f32.mrf.mxu0
        %v1229 = vadd.f32 %v1100, %v1228
        %v1230 = vpop.f32.mrf.mxu0
        %v1231 = vadd.f32 %v1102, %v1230
        %1232 = vmatmul.bf16.gmra.mxu0 %v349
        %v1233 = vpop.f32.mrf.mxu0
        %v1234 = vadd.f32 %v1105, %v1233
        %v1235 = vpop.f32.mrf.mxu0
        %v1236 = vadd.f32 %v1107, %v1235
        %1237 = vmatmul.bf16.gmra.mxu0 %v351
        %v1238 = vpop.f32.mrf.mxu0
        %v1239 = vadd.f32 %v1110, %v1238
        %v1240 = vpop.f32.mrf.mxu0
        %v1241 = vadd.f32 %v1112, %v1240
        %1242 = vmatmul.bf16.gmra.mxu0 %v353
        %v1243 = vpop.f32.mrf.mxu0
        %v1244 = vadd.f32 %v1115, %v1243
        %v1245 = vpop.f32.mrf.mxu0
        %v1246 = vadd.f32 %v1117, %v1245
        %1247 = vmatmul.bf16.gmra.mxu0 %v355
        %v1248 = vpop.f32.mrf.mxu0
        %v1249 = vadd.f32 %v1120, %v1248
        %v1250 = vpop.f32.mrf.mxu0
        %v1251 = vadd.f32 %v1122, %v1250
        %1252 = vmatmul.bf16.gmra.mxu0 %v357
        %v1253 = vpop.f32.mrf.mxu0
        %v1254 = vadd.f32 %v1125, %v1253
        %v1255 = vpop.f32.mrf.mxu0
        %v1256 = vadd.f32 %v1127, %v1255
        %1257 = vmatmul.bf16.gmra.mxu0 %v359
        %v1258 = vpop.f32.mrf.mxu0
        %v1259 = vadd.f32 %v1130, %v1258
        %v1260 = vpop.f32.mrf.mxu0
        %v1261 = vadd.f32 %v1132, %v1260
        %1262 = vmatmul.bf16.gmra.mxu0 %v361
        %v1263 = vpop.f32.mrf.mxu0
        %v1264 = vadd.f32 %v1135, %v1263
        %v1265 = vpop.f32.mrf.mxu0
        %v1266 = vadd.f32 %v1137, %v1265
        %1267 = vmatmul.bf16.gmra.mxu0 %v363
        %v1268 = vpop.f32.mrf.mxu0
        %v1269 = vadd.f32 %v1140, %v1268
        %v1270 = vpop.f32.mrf.mxu0
        %v1271 = vadd.f32 %v1142, %v1270
        %1272 = vmatmul.bf16.gmra.mxu0 %v365
        %v1273 = vpop.f32.mrf.mxu0
        %v1274 = vadd.f32 %v1145, %v1273
        %v1275 = vpop.f32.mrf.mxu0
        %v1276 = vadd.f32 %v1147, %v1275
        %1277 = vmatmul.bf16.gmra.mxu0 %v367
        %v1278 = vpop.f32.mrf.mxu0
        %v1279 = vadd.f32 %v1150, %v1278
        %v1280 = vpop.f32.mrf.mxu0
        %v1281 = vadd.f32 %v1152, %v1280
        %1282 = vmatmul.bf16.gmra.mxu0 %v369
        %v1283 = vpop.f32.mrf.mxu0
        %v1284 = vadd.f32 %v1155, %v1283
        %v1285 = vpop.f32.mrf.mxu0
        %v1286 = vadd.f32 %v1157, %v1285
        %1287 = vdwg.mxu0
        %v1288 = vpack.c.bf16 %v911, %v653
        %v1289 = vpack.c.bf16 %v1169, %v1169
        %v1290 = vpack.c.bf16 %v913, %v655
        %v1291 = vpack.c.bf16 %v1171, %v1171
        %v1292 = vpack.c.bf16 %v916, %v658
        %v1293 = vpack.c.bf16 %v1174, %v1174
        %v1294 = vpack.c.bf16 %v918, %v660
        %v1295 = vpack.c.bf16 %v1176, %v1176
        %v1296 = vpack.c.bf16 %v921, %v663
        %v1297 = vpack.c.bf16 %v1179, %v1179
        %v1298 = vpack.c.bf16 %v923, %v665
        %v1299 = vpack.c.bf16 %v1181, %v1181
        %v1300 = vpack.c.bf16 %v926, %v668
        %v1301 = vpack.c.bf16 %v1184, %v1184
        %v1302 = vpack.c.bf16 %v928, %v670
        %v1303 = vpack.c.bf16 %v1186, %v1186
        %v1304 = vpack.c.bf16 %v931, %v673
        %v1305 = vpack.c.bf16 %v1189, %v1189
        %v1306 = vpack.c.bf16 %v933, %v675
        %v1307 = vpack.c.bf16 %v1191, %v1191
        %v1308 = vpack.c.bf16 %v936, %v678
        %v1309 = vpack.c.bf16 %v1194, %v1194
        %v1310 = vpack.c.bf16 %v938, %v680
        %v1311 = vpack.c.bf16 %v1196, %v1196
        %v1312 = vpack.c.bf16 %v941, %v683
        %v1313 = vpack.c.bf16 %v1199, %v1199
        %v1314 = vpack.c.bf16 %v943, %v685
        %v1315 = vpack.c.bf16 %v1201, %v1201
        %v1316 = vpack.c.bf16 %v946, %v688
        %v1317 = vpack.c.bf16 %v1204, %v1204
        %v1318 = vpack.c.bf16 %v948, %v690
        %v1319 = vpack.c.bf16 %v1206, %v1206
        %v1320 = vpack.c.bf16 %v951, %v693
        %v1321 = vpack.c.bf16 %v1209, %v1209
        %v1322 = vpack.c.bf16 %v953, %v695
        %v1323 = vpack.c.bf16 %v1211, %v1211
        %v1324 = vpack.c.bf16 %v956, %v698
        %v1325 = vpack.c.bf16 %v1214, %v1214
        %v1326 = vpack.c.bf16 %v958, %v700
        %v1327 = vpack.c.bf16 %v1216, %v1216
        %v1328 = vpack.c.bf16 %v961, %v703
        %v1329 = vpack.c.bf16 %v1219, %v1219
        %v1330 = vpack.c.bf16 %v963, %v705
        %v1331 = vpack.c.bf16 %v1221, %v1221
        %v1332 = vpack.c.bf16 %v966, %v708
        %v1333 = vpack.c.bf16 %v1224, %v1224
        %v1334 = vpack.c.bf16 %v968, %v710
        %v1335 = vpack.c.bf16 %v1226, %v1226
        %v1336 = vpack.c.bf16 %v971, %v713
        %v1337 = vpack.c.bf16 %v1229, %v1229
        %v1338 = vpack.c.bf16 %v973, %v715
        %v1339 = vpack.c.bf16 %v1231, %v1231
        %v1340 = vpack.c.bf16 %v976, %v718
        %v1341 = vpack.c.bf16 %v1234, %v1234
        %v1342 = vpack.c.bf16 %v978, %v720
        %v1343 = vpack.c.bf16 %v1236, %v1236
        %v1344 = vpack.c.bf16 %v981, %v723
        %v1345 = vpack.c.bf16 %v1239, %v1239
        %v1346 = vpack.c.bf16 %v983, %v725
        %v1347 = vpack.c.bf16 %v1241, %v1241
        %v1348 = vpack.c.bf16 %v986, %v728
        %v1349 = vpack.c.bf16 %v1244, %v1244
        %v1350 = vpack.c.bf16 %v988, %v730
        %v1351 = vpack.c.bf16 %v1246, %v1246
        %v1352 = vpack.c.bf16 %v991, %v733
        %v1353 = vpack.c.bf16 %v1249, %v1249
        %v1354 = vpack.c.bf16 %v993, %v735
        %v1355 = vpack.c.bf16 %v1251, %v1251
        %v1356 = vpack.c.bf16 %v996, %v738
        %v1357 = vpack.c.bf16 %v1254, %v1254
        %v1358 = vpack.c.bf16 %v998, %v740
        %v1359 = vpack.c.bf16 %v1256, %v1256
        %v1360 = vpack.c.bf16 %v1001, %v743
        %v1361 = vpack.c.bf16 %v1259, %v1259
        %v1362 = vpack.c.bf16 %v1003, %v745
        %v1363 = vpack.c.bf16 %v1261, %v1261
        %v1364 = vpack.c.bf16 %v1006, %v748
        %v1365 = vpack.c.bf16 %v1264, %v1264
        %v1366 = vpack.c.bf16 %v1008, %v750
        %v1367 = vpack.c.bf16 %v1266, %v1266
        %v1368 = vpack.c.bf16 %v1011, %v753
        %v1369 = vpack.c.bf16 %v1269, %v1269
        %v1370 = vpack.c.bf16 %v1013, %v755
        %v1371 = vpack.c.bf16 %v1271, %v1271
        %v1372 = vpack.c.bf16 %v1016, %v758
        %v1373 = vpack.c.bf16 %v1274, %v1274
        %v1374 = vpack.c.bf16 %v1018, %v760
        %v1375 = vpack.c.bf16 %v1276, %v1276
        %v1376 = vpack.c.bf16 %v1021, %v763
        %v1377 = vpack.c.bf16 %v1279, %v1279
        %v1378 = vpack.c.bf16 %v1023, %v765
        %v1379 = vpack.c.bf16 %v1281, %v1281
        %v1380 = vpack.c.bf16 %v1026, %v768
        %v1381 = vpack.c.bf16 %v1284, %v1284
        %v1382 = vpack.c.bf16 %v1028, %v770
        %v1383 = vpack.c.bf16 %v1286, %v1286
        %1384 = vst [vmem:[%s221] sm:$0xff] %v1288
        %1385 = vst [vmem:[%s221 + $0x8] sm:$0xf] %v1289
        %1386 = vst [vmem:[%s221 + $0xc] sm:$0xff] %v1290
        %1387 = vst [vmem:[%s221 + $0x14] sm:$0xf] %v1291
        %1388 = vst [vmem:[%s221 + $0x18] sm:$0xff] %v1292
        %1389 = vst [vmem:[%s221 + $0x20] sm:$0xf] %v1293
        %1390 = vst [vmem:[%s221 + $0x24] sm:$0xff] %v1294
        %1391 = vst [vmem:[%s221 + $0x2c] sm:$0xf] %v1295
        %1392 = vst [vmem:[%s221 + $0x30] sm:$0xff] %v1296
        %1393 = vst [vmem:[%s221 + $0x38] sm:$0xf] %v1297
        %1394 = vst [vmem:[%s221 + $0x3c] sm:$0xff] %v1298
        %1395 = vst [vmem:[%s221 + $0x44] sm:$0xf] %v1299
        %1396 = vst [vmem:[%s221 + $0x48] sm:$0xff] %v1300
        %1397 = vst [vmem:[%s221 + $0x50] sm:$0xf] %v1301
        %1398 = vst [vmem:[%s221 + $0x54] sm:$0xff] %v1302
        %1399 = vst [vmem:[%s221 + $0x5c] sm:$0xf] %v1303
        %1400 = vst [vmem:[%s221 + $0x60] sm:$0xff] %v1304
        %1401 = vst [vmem:[%s221 + $0x68] sm:$0xf] %v1305
        %1402 = vst [vmem:[%s221 + $0x6c] sm:$0xff] %v1306
        %1403 = vst [vmem:[%s221 + $0x74] sm:$0xf] %v1307
        %1404 = vst [vmem:[%s221 + $0x78] sm:$0xff] %v1308
        %1405 = vst [vmem:[%s221 + $0x80] sm:$0xf] %v1309
        %1406 = vst [vmem:[%s221 + $0x84] sm:$0xff] %v1310
        %1407 = vst [vmem:[%s221 + $0x8c] sm:$0xf] %v1311
        %1408 = vst [vmem:[%s221 + $0x90] sm:$0xff] %v1312
        %1409 = vst [vmem:[%s221 + $0x98] sm:$0xf] %v1313
        %1410 = vst [vmem:[%s221 + $0x9c] sm:$0xff] %v1314
        %1411 = vst [vmem:[%s221 + $0xa4] sm:$0xf] %v1315
        %1412 = vst [vmem:[%s221 + $0xa8] sm:$0xff] %v1316
        %1413 = vst [vmem:[%s221 + $0xb0] sm:$0xf] %v1317
        %1414 = vst [vmem:[%s221 + $0xb4] sm:$0xff] %v1318
        %1415 = vst [vmem:[%s221 + $0xbc] sm:$0xf] %v1319
        %1416 = vst [vmem:[%s221 + $0xc0] sm:$0xff] %v1320
        %1417 = vst [vmem:[%s221 + $0xc8] sm:$0xf] %v1321
        %1418 = vst [vmem:[%s221 + $0xcc] sm:$0xff] %v1322
        %1419 = vst [vmem:[%s221 + $0xd4] sm:$0xf] %v1323
        %1420 = vst [vmem:[%s221 + $0xd8] sm:$0xff] %v1324
        %1421 = vst [vmem:[%s221 + $0xe0] sm:$0xf] %v1325
        %1422 = vst [vmem:[%s221 + $0xe4] sm:$0xff] %v1326
        %1423 = vst [vmem:[%s221 + $0xec] sm:$0xf] %v1327
        %1424 = vst [vmem:[%s221 + $0xf0] sm:$0xff] %v1328
        %1425 = vst [vmem:[%s221 + $0xf8] sm:$0xf] %v1329
        %1426 = vst [vmem:[%s221 + $0xfc] sm:$0xff] %v1330
        %1427 = vst [vmem:[%s221 + $0x104] sm:$0xf] %v1331
        %1428 = vst [vmem:[%s221 + $0x108] sm:$0xff] %v1332
        %1429 = vst [vmem:[%s221 + $0x110] sm:$0xf] %v1333
        %1430 = vst [vmem:[%s221 + $0x114] sm:$0xff] %v1334
        %1431 = vst [vmem:[%s221 + $0x11c] sm:$0xf] %v1335
        %1432 = vst [vmem:[%s221 + $0x120] sm:$0xff] %v1336
        %1433 = vst [vmem:[%s221 + $0x128] sm:$0xf] %v1337
        %1434 = vst [vmem:[%s221 + $0x12c] sm:$0xff] %v1338
        %1435 = vst [vmem:[%s221 + $0x134] sm:$0xf] %v1339
        %1436 = vst [vmem:[%s221 + $0x138] sm:$0xff] %v1340
        %1437 = vst [vmem:[%s221 + $0x140] sm:$0xf] %v1341
        %1438 = vst [vmem:[%s221 + $0x144] sm:$0xff] %v1342
        %1439 = vst [vmem:[%s221 + $0x14c] sm:$0xf] %v1343
        %1440 = vst [vmem:[%s221 + $0x150] sm:$0xff] %v1344
        %1441 = vst [vmem:[%s221 + $0x158] sm:$0xf] %v1345
        %1442 = vst [vmem:[%s221 + $0x15c] sm:$0xff] %v1346
        %1443 = vst [vmem:[%s221 + $0x164] sm:$0xf] %v1347
        %1444 = vst [vmem:[%s221 + $0x168] sm:$0xff] %v1348
        %1445 = vst [vmem:[%s221 + $0x170] sm:$0xf] %v1349
        %1446 = vst [vmem:[%s221 + $0x174] sm:$0xff] %v1350
        %1447 = vst [vmem:[%s221 + $0x17c] sm:$0xf] %v1351
        %1448 = vst [vmem:[%s221 + $0x180] sm:$0xff] %v1352
        %1449 = vst [vmem:[%s221 + $0x188] sm:$0xf] %v1353
        %1450 = vst [vmem:[%s221 + $0x18c] sm:$0xff] %v1354
        %1451 = vst [vmem:[%s221 + $0x194] sm:$0xf] %v1355
        %1452 = vst [vmem:[%s221 + $0x198] sm:$0xff] %v1356
        %1453 = vst [vmem:[%s221 + $0x1a0] sm:$0xf] %v1357
        %1454 = vst [vmem:[%s221 + $0x1a4] sm:$0xff] %v1358
        %1455 = vst [vmem:[%s221 + $0x1ac] sm:$0xf] %v1359
        %1456 = vst [vmem:[%s221 + $0x1b0] sm:$0xff] %v1360
        %1457 = vst [vmem:[%s221 + $0x1b8] sm:$0xf] %v1361
        %1458 = vst [vmem:[%s221 + $0x1bc] sm:$0xff] %v1362
        %1459 = vst [vmem:[%s221 + $0x1c4] sm:$0xf] %v1363
        %1460 = vst [vmem:[%s221 + $0x1c8] sm:$0xff] %v1364
        %1461 = vst [vmem:[%s221 + $0x1d0] sm:$0xf] %v1365
        %1462 = vst [vmem:[%s221 + $0x1d4] sm:$0xff] %v1366
        %1463 = vst [vmem:[%s221 + $0x1dc] sm:$0xf] %v1367
        %1464 = vst [vmem:[%s221 + $0x1e0] sm:$0xff] %v1368
        %1465 = vst [vmem:[%s221 + $0x1e8] sm:$0xf] %v1369
        %1466 = vst [vmem:[%s221 + $0x1ec] sm:$0xff] %v1370
        %1467 = vst [vmem:[%s221 + $0x1f4] sm:$0xf] %v1371
        %1468 = vst [vmem:[%s221 + $0x1f8] sm:$0xff] %v1372
        %1469 = vst [vmem:[%s221 + $0x200] sm:$0xf] %v1373
        %1470 = vst [vmem:[%s221 + $0x204] sm:$0xff] %v1374
        %1471 = vst [vmem:[%s221 + $0x20c] sm:$0xf] %v1375
        %1472 = vst [vmem:[%s221 + $0x210] sm:$0xff] %v1376
        %1473 = vst [vmem:[%s221 + $0x218] sm:$0xf] %v1377
        %1474 = vst [vmem:[%s221 + $0x21c] sm:$0xff] %v1378
        %1475 = vst [vmem:[%s221 + $0x224] sm:$0xf] %v1379
        %1476 = vst [vmem:[%s221 + $0x228] sm:$0xff] %v1380
        %1477 = vst [vmem:[%s221 + $0x230] sm:$0xf] %v1381
        %1478 = vst [vmem:[%s221 + $0x234] sm:$0xff] %v1382
        %1479 = vst [vmem:[%s221 + $0x23c] sm:$0xf] %v1383
        %s1480 = sand.u32 %s96, 1
        %s1481 = scalar_lea.sflag [#allocation4], %s1480
        %s1482 = sand.u32 %s96, 1
        %s1483 = smul.addr %s1482, 576
        %s1484 = scalar_lea.vmem [#allocation7], %s1483
        // Predicated region
        $region37: #{tpu_custom_call.1} parent=27 // pred_check
          %p1485 = pneg %p106
        $region38: #{tpu_custom_call.1} parent=27 // pred_check_branch
          %1487 = sbr.rel (%p1485) target = $region40
        $region39: #{tpu_custom_call.1} parent=27 // pred_region
          %s1488 = smul.u32 48, %s26
          %s1489 = smul.u32 3, %s27
          %1491 = vsyncadd %s1481, 0
          %s1492 = smul.addr %s1488, 6
          %s1493 = sadd.s32 %s1489, %s1492
          %s1494 = smul.addr %s1493, 4
          %s1495 = scalar_lea.hbm %s2, %s1494
          %s1496 = sshll.u32 %s1484, 4
          %s1497 = int_to_ptr.vmem [resolvable:$true] %s1496
          %s1498 = sshll.u32 %s1495, 4
          %s1499 = int_to_ptr.hbm [resolvable:$true] %s1498
          %1504 = dma.vmem_to_hbm [thread:$0]  %s1497, 9216, %s1499, %s1481, 192, 384, 12
        $region40: #{tpu_custom_call.1} parent=27 // pred_fallthru
          _
      $region28: #{tpu_custom_call.1} parent=5 // pred_fallthru
        _
      %p1505 = scmp.le.s32.totalorder 2, %s17
      // Predicated region
      $region41: #{tpu_custom_call.1} parent=5 // pred_check
        %p1506 = pneg %p1505
      $region42: #{tpu_custom_call.1} parent=5 // pred_check_branch
        %1508 = sbr.rel (%p1506) target = $region44
      $region43: #{tpu_custom_call.1} parent=5 // pred_region
        %s1509 = ssub.s32 %s17, 2
        // Predicated region
        $region45: #{tpu_custom_call.1} parent=43 // pred_check
          %p1510 = pneg %p112
        $region46: #{tpu_custom_call.1} parent=43 // pred_check_branch
          %1512 = sbr.rel (%p1510) target = $region48
        $region47: #{tpu_custom_call.1} parent=43 // pred_region
          %s1513 = sand.u32 %s97, 1
          %s1514 = scalar_lea.sflag [#allocation4], %s1513
          %s1515 = sand.u32 %s97, 1
          %s1516 = smul.addr %s1515, 576
          %s1517 = scalar_lea.vmem [#allocation7], %s1516
          %1519 = dma.done %s1514, 9216
        $region48: #{tpu_custom_call.1} parent=43 // pred_fallthru
          _
      $region44: #{tpu_custom_call.1} parent=5 // pred_fallthru
        _
    $region6: #{tpu_custom_call.1} parent=1 // loop_footer
      %s21 = sadd.s32 1, %s17
    $region7: #{tpu_custom_call.1} parent=1 // loop_footer_branch
      %16 = sbr.rel target = $region3
    $region8: #{tpu_custom_call.1} parent=1 // loop_exit
      _
    %1520 = vsyncpa [#allocation3], 1
    %s1521 = scalar_lea.sflag [#allocation3], 1
    %1522 = vsyncpa %s1521, 1
    %1523 = vsyncpa [#allocation6], 1
    %s1524 = scalar_lea.sflag [#allocation6], 1
    %1525 = vsyncpa %s1524, 1
    %1526 = vsyncpa [#allocation4], 1
    %s1527 = scalar_lea.sflag [#allocation4], 1
    %1528 = vsyncpa %s1527, 1

</llo_original>
